<compile_context>
chip_gen: v5e
topology: v5e:2x2
jax: 0.10.0
libtpu: 0.0.40
codegen_flags: <defaults>
</compile_context>

<pallas_src>
import functools

import numpy as np
import jax
import jax.numpy as jnp
from jax.experimental import pallas as pl
from jax.experimental.pallas import tpu as pltpu

N_OSC = 4     # number of oscillators (Guido default)
NP = 128      # lane-padded oscillator axis


# ----------------------------- Pallas kernel --------------------------------
def guido_kernel(x_ref, phases_ref, wstk_ref, probs_ref, newph_ref, *, inv_fs):
    ph0 = phases_ref[...]                 # (1, NP) current phases
    x = x_ref[...]                        # (1, NP) 2*pi*f + sensory input
    wstk = wstk_ref[...]                  # (2*NP, NP) stacked [W^T ; (W/k)^T]

    def rk_step(ph):
        # RungeKuttaStepLayer.forward:
        #   x - sum_j W[i,j] sin(ph_i - ph_j) - sum_j (W/k)[i,j] sin(2(ph_i - ph_j))
        # via sin(m(a-b)) = sin(ma)cos(mb) - cos(ma)sin(mb); all four weighted
        # sums come from a single stacked MXU matmul.
        c = jnp.cos(ph)
        s = jnp.sin(ph)
        s2 = 2.0 * s * c                  # sin(2*ph)  (double angle, VPU not EUP)
        c2 = 1.0 - 2.0 * s * s            # cos(2*ph)
        z = jnp.zeros_like(c)
        lhs = jnp.concatenate(
            [jnp.concatenate([c, z], axis=1),
             jnp.concatenate([s, z], axis=1),
             jnp.concatenate([z, c2], axis=1),
             jnp.concatenate([z, s2], axis=1)], axis=0)        # (4, 2*NP)
        out = jnp.dot(lhs, wstk, preferred_element_type=jnp.float32)  # (4, NP)
        # rows of `out`: wc1 = W cos(ph), ws1 = W sin(ph),
        #                wc2 = (W/k) cos(2ph), ws2 = (W/k) sin(2ph)
        coeff = jnp.concatenate([s, -c, s2, -c2], axis=0)      # (4, NP)
        mutual = jnp.sum(coeff * out, axis=0, keepdims=True)   # (1, NP)
        return x - mutual

    # FullStepLayer.forward (RK4)
    k1 = rk_step(ph0) * inv_fs
    k2 = rk_step(ph0 + 0.5 * k1) * inv_fs
    k3 = rk_step(ph0 + 0.5 * k2) * inv_fs
    k4 = rk_step(ph0 + k3) * inv_fs
    new_ph = ph0 + (1.0 / 6.0) * (k1 + 2.0 * k2 + 2.0 * k3 + k4)
    newph_ref[...] = new_ph               # Guido: self.phases += dphase

    # output_angle = phases[2] - phases[3]
    lane = jax.lax.broadcasted_iota(jnp.int32, new_ph.shape, 1)
    sel = jnp.where(lane == 2, 1.0, jnp.where(lane == 3, -1.0, 0.0))
    ang = jnp.sum(new_ph * sel.astype(jnp.float32), axis=1, keepdims=True)
    ang = jnp.broadcast_to(ang, probs_ref.shape)               # (1, NP)

    a = np.float32(np.sqrt(1.0 / np.pi))
    sin_ang = jnp.sin(ang)
    cos_ang = jnp.cos(ang)
    prob_right = a * (1.0 + sin_ang)      # a * (1 - sin(-ang))
    prob_left = a * (1.0 - sin_ang)       # a * (1 - sin(ang))
    prob_forward = a * (1.0 + cos_ang)    # a * (1 - cos(pi - ang))

    # softmax over the 3 logits (bounded -> no max-subtraction needed; padded
    # lanes masked to 0 before the sum).
    logits = jnp.where(lane == 0, prob_right,
             jnp.where(lane == 1, prob_left, prob_forward))
    e = jnp.where(lane < 3, jnp.exp(logits), 0.0)
    probs_ref[...] = e / jnp.sum(e, axis=1, keepdims=True)


# ------------------------------ JAX wrapper ----------------------------------
def build_guido_constants(frequency, phase_coupling, k):
    """Padded device constants + plain numpy params, mirroring
    RungeKuttaStepLayer.__init__ (n_oscillators = 4). Built ONCE and reused."""
    frequency = np.asarray(frequency, np.float32).reshape(-1)
    pc = [float(v) for v in np.asarray(phase_coupling).reshape(-1)[:6]]
    a_sens, a_ips_l, a_ips_r, a_con_l, a_con_r, a_motor = pc
    W = np.array([[0.0,     a_sens,  a_ips_l, a_con_l],
                  [a_sens,  0.0,     a_con_r, a_ips_r],
                  [a_ips_l, a_con_r, 0.0,     a_motor],
                  [a_con_l, a_ips_r, a_motor, 0.0]], np.float32)
    Wa = W / np.float32(k)
    freq_array = np.array([frequency[0], frequency[0],
                           frequency[1], frequency[1]], np.float32)

    freq_row = np.zeros((1, NP), np.float32)
    freq_row[0, :N_OSC] = 2.0 * np.pi * freq_array

    # Block-stacked, transposed coupling RHS: `row @ wstk` computes
    # sum_j W[i,j] * row[j] for the in-phase block (rows 0..NP-1) and the
    # anti-phase block (rows NP..2*NP-1).
    wstk = np.zeros((2 * NP, NP), np.float32)
    wstk[:N_OSC, :N_OSC] = W.T
    wstk[NP:NP + N_OSC, :N_OSC] = Wa.T

    consts = (jnp.asarray(freq_row), jnp.asarray(wstk))
    return consts, (freq_array, W, Wa)


def pad_phases(phases):
    """(4,) phases -> carried (1, NP) padded phase row."""
    return jnp.zeros((1, NP), jnp.float32).at[0, :N_OSC].set(
        jnp.asarray(phases, jnp.float32))


def make_guido_forward(fs):
    """Returns jitted forward(state, phases_row, freq_row, wstk)
       -> (probs (1, 3), new_phases_row (1, NP))."""
    inv_fs = 1.0 / float(fs)
    vmem = pl.BlockSpec(memory_space=pltpu.MemorySpace.VMEM)
    call = pl.pallas_call(
        functools.partial(guido_kernel, inv_fs=inv_fs),
        out_shape=(jax.ShapeDtypeStruct((1, NP), jnp.float32),
                   jax.ShapeDtypeStruct((1, NP), jnp.float32)),
        in_specs=[vmem, vmem, vmem],
        out_specs=(vmem, vmem),
    )

    @jax.jit
    def forward(state, phases_row, freq_row, wstk):
        s = jnp.reshape(jnp.asarray(state, jnp.float32), (-1,))   # torch.squeeze
        # x = 2*pi*frequency_array + new_input (input only drives oscillators 0, 1)
        x = freq_row.at[0, 0].add(s[0]).at[0, 1].add(s[1])
        probs_pad, new_row = call(x, phases_row, wstk)
        return probs_pad[:, :3], new_row

    return forward


# --------------------------- pure-numpy reference ----------------------------
def reference_forward(state, phases, freq_array, W, Wa, fs):
    s = np.asarray(state, np.float64).reshape(-1)
    new_input = np.zeros(N_OSC); new_input[0] = s[0]; new_input[1] = s[1]
    ph = np.asarray(phases, np.float64).copy()

    def mutual(p, Wm, mult):
        diff = mult * (p[:, None] - p[None, :])
        return np.sum(np.asarray(Wm, np.float64) * np.sin(diff), axis=1)

    def rk(p):
        return (2.0 * np.pi * np.asarray(freq_array, np.float64) + new_input
                - mutual(p, W, 1.0) - mutual(p, Wa, 2.0))

    k1 = rk(ph) / fs
    k2 = rk(ph + 0.5 * k1) / fs
    k3 = rk(ph + 0.5 * k2) / fs
    k4 = rk(ph + k3) / fs
    new_ph = ph + (k1 + 2 * k2 + 2 * k3 + k4) / 6.0
    ang = new_ph[2] - new_ph[3]
    a = np.sqrt(1.0 / np.pi)
    logits = np.array([a * (1 - np.sin(-ang)),
                       a * (1 - np.sin(ang)),
                       a * (1 - np.cos(np.pi - ang))])
    e = np.exp(logits - logits.max())
    return (e / e.sum())[None, :], new_ph


# ---------------------------------- main --------------------------------------
if __name__ == "__main__":
    # Deterministic parameters (Guido.__init__ shapes: frequency (2,),
    # phase_coupling needs 6 entries for the 4-oscillator coupling, k scalar).
    fs = 100.0
    frequency = np.array([1.0, 2.0], np.float32)
    phase_coupling = np.array([0.5, 0.3, 0.3, 0.2, 0.2, 0.8], np.float32)
    k = 2.0

    (freq_row, wstk), (freq_array, W, Wa) = build_guido_constants(
        frequency, phase_coupling, k)
    forward = make_guido_forward(fs)

    phases0 = np.zeros(N_OSC, np.float32)          # Guido.__init__: zero phases
    phases_row = pad_phases(phases0)               # carried padded state row
    phases_np = np.asarray(phases0, np.float64)

    key = jax.random.PRNGKey(0)
    for _ in range(3):                             # a few env steps, state carried
        key, sub = jax.random.split(key)
        state = jax.random.uniform(sub, (1, 2), jnp.float32)  # [batch=1, 2 sensors]

        probs, phases_row = forward(state, phases_row, freq_row, wstk)
        probs = jax.block_until_ready(probs)
        phases_row = jax.block_until_ready(phases_row)

        probs_ref, phases_np = reference_forward(np.asarray(state), phases_np,
                                                 freq_array, W, Wa, fs)
        np.testing.assert_allclose(np.asarray(phases_row)[0, :N_OSC], phases_np,
                                   rtol=1e-4, atol=1e-5)
        np.testing.assert_allclose(np.asarray(probs), probs_ref,
                                   rtol=1e-4, atol=1e-5)

    # TODO(synk): Categorical sampling / log_prob in Guido.act() and the
    # persistent `self.phases` mutation stay outside the kernel (the padded
    # phase row is returned so the caller carries the state); multi-timestep
    # fusion and environment batching onto sublanes (plus the v7x two-core
    # split) are left for when the RL loop provides batched / known-ahead inputs.
    print("KERNEL_OK")
</pallas_src>

<mosaic_0001>
module attributes {stable_mosaic.version = 11 : i64} {
  func.func @guido_kernel(%arg0: memref<1x128xf32, #tpu.memory_space<vmem>>, %arg1: memref<1x128xf32, #tpu.memory_space<vmem>>, %arg2: memref<256x128xf32, #tpu.memory_space<vmem>>, %arg3: memref<1x128xf32, #tpu.memory_space<vmem>>, %arg4: memref<1x128xf32, #tpu.memory_space<vmem>>) attributes {dimension_semantics = [], scalar_prefetch = 0 : i64, scratch_operands = 0 : i64, tpu.core_type = #tpu.core_type<tc>} {
    %c0 = arith.constant 0 : index
    %c0_0 = arith.constant 0 : index
    %0 = vector.load %arg1[%c0, %c0_0] : memref<1x128xf32, #tpu.memory_space<vmem>>, vector<1x128xf32>
    %c0_1 = arith.constant 0 : index
    %c0_2 = arith.constant 0 : index
    %1 = vector.load %arg0[%c0_1, %c0_2] : memref<1x128xf32, #tpu.memory_space<vmem>>, vector<1x128xf32>
    %c0_3 = arith.constant 0 : index
    %c0_4 = arith.constant 0 : index
    %2 = vector.load %arg2[%c0_3, %c0_4] : memref<256x128xf32, #tpu.memory_space<vmem>>, vector<256x128xf32>
    %3 = math.cos %0 : vector<1x128xf32>
    %4 = math.sin %0 : vector<1x128xf32>
    %cst = arith.constant 2.000000e+00 : f32
    %5 = vector.broadcast %cst : f32 to vector<1x128xf32>
    %6 = arith.mulf %5, %4 : vector<1x128xf32>
    %7 = arith.mulf %6, %3 : vector<1x128xf32>
    %cst_5 = arith.constant 2.000000e+00 : f32
    %8 = vector.broadcast %cst_5 : f32 to vector<1x128xf32>
    %9 = arith.mulf %8, %4 : vector<1x128xf32>
    %10 = arith.mulf %9, %4 : vector<1x128xf32>
    %cst_6 = arith.constant 1.000000e+00 : f32
    %11 = vector.broadcast %cst_6 : f32 to vector<1x128xf32>
    %12 = arith.subf %11, %10 : vector<1x128xf32>
    %cst_7 = arith.constant 0.000000e+00 : f32
    %13 = vector.broadcast %cst_7 : f32 to vector<1x128xf32>
    %14 = tpu.concatenate %3, %13 in 1 : vector<1x128xf32>, vector<1x128xf32> -> vector<1x256xf32>
    %15 = tpu.concatenate %4, %13 in 1 : vector<1x128xf32>, vector<1x128xf32> -> vector<1x256xf32>
    %16 = tpu.concatenate %13, %12 in 1 : vector<1x128xf32>, vector<1x128xf32> -> vector<1x256xf32>
    %17 = tpu.concatenate %13, %7 in 1 : vector<1x128xf32>, vector<1x128xf32> -> vector<1x256xf32>
    %18 = tpu.concatenate %14, %15, %16, %17 in 0 : vector<1x256xf32>, vector<1x256xf32>, vector<1x256xf32>, vector<1x256xf32> -> vector<4x256xf32>
    %cst_8 = arith.constant dense<0.000000e+00> : vector<4x128xf32>
    %19 = tpu.matmul %18, %2, %cst_8 {dimension_numbers = #tpu.dot_dimension_numbers<[1], [0], [0], [1], [0, 0, 1, 1], [], []>} : vector<4x256xf32>, vector<256x128xf32>, vector<4x128xf32> -> vector<4x128xf32>
    %cst_9 = arith.constant 0.000000e+00 : f32
    %20 = vector.broadcast %cst_9 : f32 to vector<1x128xf32>
    %21 = arith.subf %20, %3 : vector<1x128xf32>
    %cst_10 = arith.constant 0.000000e+00 : f32
    %22 = vector.broadcast %cst_10 : f32 to vector<1x128xf32>
    %23 = arith.subf %22, %12 : vector<1x128xf32>
    %24 = tpu.concatenate %4, %21, %7, %23 in 0 : vector<1x128xf32>, vector<1x128xf32>, vector<1x128xf32>, vector<1x128xf32> -> vector<4x128xf32>
    %25 = arith.mulf %24, %19 : vector<4x128xf32>
    %cst_11 = arith.constant dense<0.000000e+00> : vector<128xf32>
    %26 = vector.multi_reduction <add>, %25, %cst_11 [0] : vector<4x128xf32> to vector<128xf32>
    %27 = vector.shape_cast %26 : vector<128xf32> to vector<1x128xf32>
    %28 = arith.subf %1, %27 : vector<1x128xf32>
    %cst_12 = arith.constant 0.00999999977 : f32
    %29 = vector.broadcast %cst_12 : f32 to vector<1x128xf32>
    %30 = arith.mulf %28, %29 : vector<1x128xf32>
    %cst_13 = arith.constant 5.000000e-01 : f32
    %31 = vector.broadcast %cst_13 : f32 to vector<1x128xf32>
    %32 = arith.mulf %31, %30 : vector<1x128xf32>
    %33 = arith.addf %0, %32 : vector<1x128xf32>
    %34 = math.cos %33 : vector<1x128xf32>
    %35 = math.sin %33 : vector<1x128xf32>
    %cst_14 = arith.constant 2.000000e+00 : f32
    %36 = vector.broadcast %cst_14 : f32 to vector<1x128xf32>
    %37 = arith.mulf %36, %35 : vector<1x128xf32>
    %38 = arith.mulf %37, %34 : vector<1x128xf32>
    %cst_15 = arith.constant 2.000000e+00 : f32
    %39 = vector.broadcast %cst_15 : f32 to vector<1x128xf32>
    %40 = arith.mulf %39, %35 : vector<1x128xf32>
    %41 = arith.mulf %40, %35 : vector<1x128xf32>
    %cst_16 = arith.constant 1.000000e+00 : f32
    %42 = vector.broadcast %cst_16 : f32 to vector<1x128xf32>
    %43 = arith.subf %42, %41 : vector<1x128xf32>
    %cst_17 = arith.constant 0.000000e+00 : f32
    %44 = vector.broadcast %cst_17 : f32 to vector<1x128xf32>
    %45 = tpu.concatenate %34, %44 in 1 : vector<1x128xf32>, vector<1x128xf32> -> vector<1x256xf32>
    %46 = tpu.concatenate %35, %44 in 1 : vector<1x128xf32>, vector<1x128xf32> -> vector<1x256xf32>
    %47 = tpu.concatenate %44, %43 in 1 : vector<1x128xf32>, vector<1x128xf32> -> vector<1x256xf32>
    %48 = tpu.concatenate %44, %38 in 1 : vector<1x128xf32>, vector<1x128xf32> -> vector<1x256xf32>
    %49 = tpu.concatenate %45, %46, %47, %48 in 0 : vector<1x256xf32>, vector<1x256xf32>, vector<1x256xf32>, vector<1x256xf32> -> vector<4x256xf32>
    %cst_18 = arith.constant dense<0.000000e+00> : vector<4x128xf32>
    %50 = tpu.matmul %49, %2, %cst_18 {dimension_numbers = #tpu.dot_dimension_numbers<[1], [0], [0], [1], [0, 0, 1, 1], [], []>} : vector<4x256xf32>, vector<256x128xf32>, vector<4x128xf32> -> vector<4x128xf32>
    %cst_19 = arith.constant 0.000000e+00 : f32
    %51 = vector.broadcast %cst_19 : f32 to vector<1x128xf32>
    %52 = arith.subf %51, %34 : vector<1x128xf32>
    %cst_20 = arith.constant 0.000000e+00 : f32
    %53 = vector.broadcast %cst_20 : f32 to vector<1x128xf32>
    %54 = arith.subf %53, %43 : vector<1x128xf32>
    %55 = tpu.concatenate %35, %52, %38, %54 in 0 : vector<1x128xf32>, vector<1x128xf32>, vector<1x128xf32>, vector<1x128xf32> -> vector<4x128xf32>
    %56 = arith.mulf %55, %50 : vector<4x128xf32>
    %cst_21 = arith.constant dense<0.000000e+00> : vector<128xf32>
    %57 = vector.multi_reduction <add>, %56, %cst_21 [0] : vector<4x128xf32> to vector<128xf32>
    %58 = vector.shape_cast %57 : vector<128xf32> to vector<1x128xf32>
    %59 = arith.subf %1, %58 : vector<1x128xf32>
    %cst_22 = arith.constant 0.00999999977 : f32
    %60 = vector.broadcast %cst_22 : f32 to vector<1x128xf32>
    %61 = arith.mulf %59, %60 : vector<1x128xf32>
    %cst_23 = arith.constant 5.000000e-01 : f32
    %62 = vector.broadcast %cst_23 : f32 to vector<1x128xf32>
    %63 = arith.mulf %62, %61 : vector<1x128xf32>
    %64 = arith.addf %0, %63 : vector<1x128xf32>
    %65 = math.cos %64 : vector<1x128xf32>
    %66 = math.sin %64 : vector<1x128xf32>
    %cst_24 = arith.constant 2.000000e+00 : f32
    %67 = vector.broadcast %cst_24 : f32 to vector<1x128xf32>
    %68 = arith.mulf %67, %66 : vector<1x128xf32>
    %69 = arith.mulf %68, %65 : vector<1x128xf32>
    %cst_25 = arith.constant 2.000000e+00 : f32
    %70 = vector.broadcast %cst_25 : f32 to vector<1x128xf32>
    %71 = arith.mulf %70, %66 : vector<1x128xf32>
    %72 = arith.mulf %71, %66 : vector<1x128xf32>
    %cst_26 = arith.constant 1.000000e+00 : f32
    %73 = vector.broadcast %cst_26 : f32 to vector<1x128xf32>
    %74 = arith.subf %73, %72 : vector<1x128xf32>
    %cst_27 = arith.constant 0.000000e+00 : f32
    %75 = vector.broadcast %cst_27 : f32 to vector<1x128xf32>
    %76 = tpu.concatenate %65, %75 in 1 : vector<1x128xf32>, vector<1x128xf32> -> vector<1x256xf32>
    %77 = tpu.concatenate %66, %75 in 1 : vector<1x128xf32>, vector<1x128xf32> -> vector<1x256xf32>
    %78 = tpu.concatenate %75, %74 in 1 : vector<1x128xf32>, vector<1x128xf32> -> vector<1x256xf32>
    %79 = tpu.concatenate %75, %69 in 1 : vector<1x128xf32>, vector<1x128xf32> -> vector<1x256xf32>
    %80 = tpu.concatenate %76, %77, %78, %79 in 0 : vector<1x256xf32>, vector<1x256xf32>, vector<1x256xf32>, vector<1x256xf32> -> vector<4x256xf32>
    %cst_28 = arith.constant dense<0.000000e+00> : vector<4x128xf32>
    %81 = tpu.matmul %80, %2, %cst_28 {dimension_numbers = #tpu.dot_dimension_numbers<[1], [0], [0], [1], [0, 0, 1, 1], [], []>} : vector<4x256xf32>, vector<256x128xf32>, vector<4x128xf32> -> vector<4x128xf32>
    %cst_29 = arith.constant 0.000000e+00 : f32
    %82 = vector.broadcast %cst_29 : f32 to vector<1x128xf32>
    %83 = arith.subf %82, %65 : vector<1x128xf32>
    %cst_30 = arith.constant 0.000000e+00 : f32
    %84 = vector.broadcast %cst_30 : f32 to vector<1x128xf32>
    %85 = arith.subf %84, %74 : vector<1x128xf32>
    %86 = tpu.concatenate %66, %83, %69, %85 in 0 : vector<1x128xf32>, vector<1x128xf32>, vector<1x128xf32>, vector<1x128xf32> -> vector<4x128xf32>
    %87 = arith.mulf %86, %81 : vector<4x128xf32>
    %cst_31 = arith.constant dense<0.000000e+00> : vector<128xf32>
    %88 = vector.multi_reduction <add>, %87, %cst_31 [0] : vector<4x128xf32> to vector<128xf32>
    %89 = vector.shape_cast %88 : vector<128xf32> to vector<1x128xf32>
    %90 = arith.subf %1, %89 : vector<1x128xf32>
    %cst_32 = arith.constant 0.00999999977 : f32
    %91 = vector.broadcast %cst_32 : f32 to vector<1x128xf32>
    %92 = arith.mulf %90, %91 : vector<1x128xf32>
    %93 = arith.addf %0, %92 : vector<1x128xf32>
    %94 = math.cos %93 : vector<1x128xf32>
    %95 = math.sin %93 : vector<1x128xf32>
    %cst_33 = arith.constant 2.000000e+00 : f32
    %96 = vector.broadcast %cst_33 : f32 to vector<1x128xf32>
    %97 = arith.mulf %96, %95 : vector<1x128xf32>
    %98 = arith.mulf %97, %94 : vector<1x128xf32>
    %cst_34 = arith.constant 2.000000e+00 : f32
    %99 = vector.broadcast %cst_34 : f32 to vector<1x128xf32>
    %100 = arith.mulf %99, %95 : vector<1x128xf32>
    %101 = arith.mulf %100, %95 : vector<1x128xf32>
    %cst_35 = arith.constant 1.000000e+00 : f32
    %102 = vector.broadcast %cst_35 : f32 to vector<1x128xf32>
    %103 = arith.subf %102, %101 : vector<1x128xf32>
    %cst_36 = arith.constant 0.000000e+00 : f32
    %104 = vector.broadcast %cst_36 : f32 to vector<1x128xf32>
    %105 = tpu.concatenate %94, %104 in 1 : vector<1x128xf32>, vector<1x128xf32> -> vector<1x256xf32>
    %106 = tpu.concatenate %95, %104 in 1 : vector<1x128xf32>, vector<1x128xf32> -> vector<1x256xf32>
    %107 = tpu.concatenate %104, %103 in 1 : vector<1x128xf32>, vector<1x128xf32> -> vector<1x256xf32>
    %108 = tpu.concatenate %104, %98 in 1 : vector<1x128xf32>, vector<1x128xf32> -> vector<1x256xf32>
    %109 = tpu.concatenate %105, %106, %107, %108 in 0 : vector<1x256xf32>, vector<1x256xf32>, vector<1x256xf32>, vector<1x256xf32> -> vector<4x256xf32>
    %cst_37 = arith.constant dense<0.000000e+00> : vector<4x128xf32>
    %110 = tpu.matmul %109, %2, %cst_37 {dimension_numbers = #tpu.dot_dimension_numbers<[1], [0], [0], [1], [0, 0, 1, 1], [], []>} : vector<4x256xf32>, vector<256x128xf32>, vector<4x128xf32> -> vector<4x128xf32>
    %cst_38 = arith.constant 0.000000e+00 : f32
    %111 = vector.broadcast %cst_38 : f32 to vector<1x128xf32>
    %112 = arith.subf %111, %94 : vector<1x128xf32>
    %cst_39 = arith.constant 0.000000e+00 : f32
    %113 = vector.broadcast %cst_39 : f32 to vector<1x128xf32>
    %114 = arith.subf %113, %103 : vector<1x128xf32>
    %115 = tpu.concatenate %95, %112, %98, %114 in 0 : vector<1x128xf32>, vector<1x128xf32>, vector<1x128xf32>, vector<1x128xf32> -> vector<4x128xf32>
    %116 = arith.mulf %115, %110 : vector<4x128xf32>
    %cst_40 = arith.constant dense<0.000000e+00> : vector<128xf32>
    %117 = vector.multi_reduction <add>, %116, %cst_40 [0] : vector<4x128xf32> to vector<128xf32>
    %118 = vector.shape_cast %117 : vector<128xf32> to vector<1x128xf32>
    %119 = arith.subf %1, %118 : vector<1x128xf32>
    %cst_41 = arith.constant 0.00999999977 : f32
    %120 = vector.broadcast %cst_41 : f32 to vector<1x128xf32>
    %121 = arith.mulf %119, %120 : vector<1x128xf32>
    %cst_42 = arith.constant 2.000000e+00 : f32
    %122 = vector.broadcast %cst_42 : f32 to vector<1x128xf32>
    %123 = arith.mulf %122, %61 : vector<1x128xf32>
    %124 = arith.addf %30, %123 : vector<1x128xf32>
    %cst_43 = arith.constant 2.000000e+00 : f32
    %125 = vector.broadcast %cst_43 : f32 to vector<1x128xf32>
    %126 = arith.mulf %125, %92 : vector<1x128xf32>
    %127 = arith.addf %124, %126 : vector<1x128xf32>
    %128 = arith.addf %127, %121 : vector<1x128xf32>
    %cst_44 = arith.constant 0.166666672 : f32
    %129 = vector.broadcast %cst_44 : f32 to vector<1x128xf32>
    %130 = arith.mulf %129, %128 : vector<1x128xf32>
    %131 = arith.addf %0, %130 : vector<1x128xf32>
    %c0_45 = arith.constant 0 : index
    %c0_46 = arith.constant 0 : index
    %132 = vector.load %arg4[%c0_45, %c0_46] : memref<1x128xf32, #tpu.memory_space<vmem>>, vector<1x128xf32>
    tpu.vector_store %arg4[%c0_45, %c0_46], %131 {strides = array<i32>} : memref<1x128xf32, #tpu.memory_space<vmem>>, vector<1x128xf32>,
    %133 = tpu.iota {dimensions = array<i32: 1>} : vector<1x128xi32>
    %c2_i32 = arith.constant 2 : i32
    %134 = vector.broadcast %c2_i32 : i32 to vector<1x128xi32>
    %135 = arith.cmpi eq, %133, %134 : vector<1x128xi32>
    %c3_i32 = arith.constant 3 : i32
    %136 = vector.broadcast %c3_i32 : i32 to vector<1x128xi32>
    %137 = arith.cmpi eq, %133, %136 : vector<1x128xi32>
    %cst_47 = arith.constant -1.000000e+00 : f32
    %cst_48 = arith.constant 0.000000e+00 : f32
    %138 = vector.broadcast %cst_47 : f32 to vector<1x128xf32>
    %139 = vector.broadcast %cst_48 : f32 to vector<1x128xf32>
    %140 = arith.select %137, %138, %139 : vector<1x128xi1>, vector<1x128xf32>
    %cst_49 = arith.constant 1.000000e+00 : f32
    %141 = vector.broadcast %cst_49 : f32 to vector<1x128xf32>
    %142 = arith.select %135, %141, %140 : vector<1x128xi1>, vector<1x128xf32>
    %143 = arith.mulf %131, %142 : vector<1x128xf32>
    %cst_50 = arith.constant dense<0.000000e+00> : vector<1xf32>
    %144 = vector.multi_reduction <add>, %143, %cst_50 [1] : vector<1x128xf32> to vector<1xf32>
    %145 = vector.shape_cast %144 : vector<1xf32> to vector<1x1xf32>
    %146 = vector.shape_cast %145 : vector<1x1xf32> to vector<1x1xf32>
    %147 = vector.broadcast %146 : vector<1x1xf32> to vector<1x128xf32>
    %148 = math.sin %147 : vector<1x128xf32>
    %149 = math.cos %147 : vector<1x128xf32>
    %cst_51 = arith.constant 1.000000e+00 : f32
    %150 = vector.broadcast %cst_51 : f32 to vector<1x128xf32>
    %151 = arith.addf %150, %148 : vector<1x128xf32>
    %cst_52 = arith.constant 0.564189613 : f32
    %152 = vector.broadcast %cst_52 : f32 to vector<1x128xf32>
    %153 = arith.mulf %152, %151 : vector<1x128xf32>
    %cst_53 = arith.constant 1.000000e+00 : f32
    %154 = vector.broadcast %cst_53 : f32 to vector<1x128xf32>
    %155 = arith.subf %154, %148 : vector<1x128xf32>
    %cst_54 = arith.constant 0.564189613 : f32
    %156 = vector.broadcast %cst_54 : f32 to vector<1x128xf32>
    %157 = arith.mulf %156, %155 : vector<1x128xf32>
    %cst_55 = arith.constant 1.000000e+00 : f32
    %158 = vector.broadcast %cst_55 : f32 to vector<1x128xf32>
    %159 = arith.addf %158, %149 : vector<1x128xf32>
    %cst_56 = arith.constant 0.564189613 : f32
    %160 = vector.broadcast %cst_56 : f32 to vector<1x128xf32>
    %161 = arith.mulf %160, %159 : vector<1x128xf32>
    %c0_i32 = arith.constant 0 : i32
    %162 = vector.broadcast %c0_i32 : i32 to vector<1x128xi32>
    %163 = arith.cmpi eq, %133, %162 : vector<1x128xi32>
    %c1_i32 = arith.constant 1 : i32
    %164 = vector.broadcast %c1_i32 : i32 to vector<1x128xi32>
    %165 = arith.cmpi eq, %133, %164 : vector<1x128xi32>
    %166 = arith.select %165, %157, %161 : vector<1x128xi1>, vector<1x128xf32>
    %167 = arith.select %163, %153, %166 : vector<1x128xi1>, vector<1x128xf32>
    %c3_i32_57 = arith.constant 3 : i32
    %168 = vector.broadcast %c3_i32_57 : i32 to vector<1x128xi32>
    %169 = arith.cmpi slt, %133, %168 : vector<1x128xi32>
    %170 = math.exp %167 : vector<1x128xf32>
    %cst_58 = arith.constant 0.000000e+00 : f32
    %171 = vector.broadcast %cst_58 : f32 to vector<1x128xf32>
    %172 = arith.select %169, %170, %171 : vector<1x128xi1>, vector<1x128xf32>
    %cst_59 = arith.constant dense<0.000000e+00> : vector<1xf32>
    %173 = vector.multi_reduction <add>, %172, %cst_59 [1] : vector<1x128xf32> to vector<1xf32>
    %174 = vector.shape_cast %173 : vector<1xf32> to vector<1x1xf32>
    %175 = vector.broadcast %174 : vector<1x1xf32> to vector<1x128xf32>
    %176 = arith.divf %172, %175 : vector<1x128xf32>
    %c0_60 = arith.constant 0 : index
    %c0_61 = arith.constant 0 : index
    %177 = vector.load %arg3[%c0_60, %c0_61] : memref<1x128xf32, #tpu.memory_space<vmem>>, vector<1x128xf32>
    tpu.vector_store %arg3[%c0_60, %c0_61], %176 {strides = array<i32>} : memref<1x128xf32, #tpu.memory_space<vmem>>, vector<1x128xf32>,
    return
  }
}

</mosaic_0001>

<llo_original>
// kernel: forward.1
$region0: #{forward.1}
  #allocation0 [shape = 'u32[]', space=smem, size = 0x4, offset = 0x4, fixed_abs, tag = 'smem constant byte address 0x4 - core index']
  #allocation1 [shape = 'u32[72,128]{1,0:T(1,128)}', space=vmem, size = 0x9000, scoped, tag = 'internal scratch']
  %s0 = inlined_call_operand.vmem [shape: f32[1,128], index: 0, kind: input, shape index: {}]
  %s1 = inlined_call_operand.vmem [shape: f32[1,128], index: 1, kind: input, shape index: {}]
  %s2 = inlined_call_operand.hbm [shape: f32[256,128], index: 2, kind: input, shape index: {}]
  %s3 = inlined_call_operand.hbm [shape: f32[1,128], index: 3, kind: output, shape index: {0}]
  %s4 = inlined_call_operand.hbm [shape: f32[1,128], index: 4, kind: output, shape index: {1}]
  %5 = xla_tuple %s3, %s4
  %s6 = sld [smem:[#allocation0]]
  $region34: #{forward.1} parent=0
    _
  %s8 = ssub.s32 1, %s6
  %s9 = scalar_select 0, %s8, %s6
  $region1: #{forward.1} parent=0
    #allocation2 [shape = 'u8[131072]{0}', space=vmem, size = 0x20000, scoped, tag = 'input window, operand 2, single buffered']
    #allocation3 [shape = 's32[1]{0}', space=sflag, size = 0x4, scoped, tag = 'scoped memory for forward.1']
    #allocation4 [shape = 's32[1]{0}', space=sflag, size = 0x4, scoped, tag = 'scoped memory for forward.1']
    #allocation5 [shape = 'u8[512]{0}', space=vmem, size = 0x400, scoped, tag = 'output window, operand 0, single buffered']
    #allocation6 [shape = 'u8[512]{0}', space=vmem, size = 0x400, scoped, tag = 'output window, operand 1, single buffered']
    #allocation7 [shape = 's32[1]{0}', space=sflag, size = 0x4, scoped, tag = 'scoped memory for forward.1']
    %10 = vsyncpa [#allocation3], 0
    %11 = vsyncpa [#allocation4], 0
    %12 = vsyncpa [#allocation7], 0
    // Predicated region
    $region2: #{forward.1} parent=1 // pred_check
      _
    $region3: #{forward.1} parent=1 // pred_check_branch
      %14 = sbr.rel (0) target = $region5
    $region4: #{forward.1} parent=1 // pred_region
      _
    $region5: #{forward.1} parent=1 // pred_fallthru
      _
    // Predicated region
    $region6: #{forward.1} parent=1 // pred_check
      _
    $region7: #{forward.1} parent=1 // pred_check_branch
      %16 = sbr.rel (0) target = $region9
    $region8: #{forward.1} parent=1 // pred_region
      _
    $region9: #{forward.1} parent=1 // pred_fallthru
      _
    // Predicated region
    $region10: #{forward.1} parent=1 // pred_check
      _
    $region11: #{forward.1} parent=1 // pred_check_branch
      %18 = sbr.rel (0) target = $region13
    $region12: #{forward.1} parent=1 // pred_region
      %20 = vsyncadd [#allocation3], 0
      %s21 = sshll.u32 %s2, 4
      %s22 = int_to_ptr.hbm [resolvable:$true] %s21
      %s23 = sshll.u32 [#allocation2], 4
      %s24 = int_to_ptr.vmem [resolvable:$true] %s23
      %29 = dma.hbm_to_vmem [thread:$0]  %s22, 4096, %s24, [#allocation3], 128, 128, 8
    $region13: #{forward.1} parent=1 // pred_fallthru
      _
    // Predicated region
    $region14: #{forward.1} parent=1 // pred_check
      _
    $region15: #{forward.1} parent=1 // pred_check_branch
      %31 = sbr.rel (0) target = $region17
    $region16: #{forward.1} parent=1 // pred_region
      %33 = dma.done [#allocation3], 4096
    $region17: #{forward.1} parent=1 // pred_fallthru
      _
    %v34 = vld [vmem:[%s1] sm:$0x1]
    %v35 = vld [vmem:[%s0] sm:$0x1]
    %v36 = vld [vmem:[#allocation2] sm:$0xff]
    %v37 = vld [vmem:[#allocation2 + $0x8] sm:$0xff]
    %v38 = vld [vmem:[#allocation2 + $0x10] sm:$0xff]
    %v39 = vld [vmem:[#allocation2 + $0x18] sm:$0xff]
    %v40 = vld [vmem:[#allocation2 + $0x20] sm:$0xff]
    %v41 = vld [vmem:[#allocation2 + $0x28] sm:$0xff]
    %v42 = vld [vmem:[#allocation2 + $0x30] sm:$0xff]
    %v43 = vld [vmem:[#allocation2 + $0x38] sm:$0xff]
    %v44 = vld [vmem:[#allocation2 + $0x40] sm:$0xff]
    %v45 = vld [vmem:[#allocation2 + $0x48] sm:$0xff]
    %v46 = vld [vmem:[#allocation2 + $0x50] sm:$0xff]
    %v47 = vld [vmem:[#allocation2 + $0x58] sm:$0xff]
    %v48 = vld [vmem:[#allocation2 + $0x60] sm:$0xff]
    %v49 = vld [vmem:[#allocation2 + $0x68] sm:$0xff]
    %v50 = vld [vmem:[#allocation2 + $0x70] sm:$0xff]
    %v51 = vld [vmem:[#allocation2 + $0x78] sm:$0xff]
    %v52 = vld [vmem:[#allocation2 + $0x80] sm:$0xff]
    %v53 = vld [vmem:[#allocation2 + $0x88] sm:$0xff]
    %v54 = vld [vmem:[#allocation2 + $0x90] sm:$0xff]
    %v55 = vld [vmem:[#allocation2 + $0x98] sm:$0xff]
    %v56 = vld [vmem:[#allocation2 + $0xa0] sm:$0xff]
    %v57 = vld [vmem:[#allocation2 + $0xa8] sm:$0xff]
    %v58 = vld [vmem:[#allocation2 + $0xb0] sm:$0xff]
    %v59 = vld [vmem:[#allocation2 + $0xb8] sm:$0xff]
    %v60 = vld [vmem:[#allocation2 + $0xc0] sm:$0xff]
    %v61 = vld [vmem:[#allocation2 + $0xc8] sm:$0xff]
    %v62 = vld [vmem:[#allocation2 + $0xd0] sm:$0xff]
    %v63 = vld [vmem:[#allocation2 + $0xd8] sm:$0xff]
    %v64 = vld [vmem:[#allocation2 + $0xe0] sm:$0xff]
    %v65 = vld [vmem:[#allocation2 + $0xe8] sm:$0xff]
    %v66 = vld [vmem:[#allocation2 + $0xf0] sm:$0xff]
    %v67 = vld [vmem:[#allocation2 + $0xf8] sm:$0xff]
    %v68 = vand.u32 2147483647, %v34
    %vm69 = vcmp.le.f32.partialorder %v68, 0.7853982
    %vm70 = vcmp.lt.s32.totalorder %v34, 0
    %v71 = vand.u32 %v34, 2139095040
    %v72 = vshrl.u32 %v71, 23
    %v73 = vsub.s32 %v72, 127
    %v74 = vand.u32 2147483647, %v34
    %v75 = vand.u32 %v74, 8388607
    %v76 = vor.u32 %v75, 8388608
    %v77 = vsub.s32 0, %v76
    %v78 = vadd.s32 %v73, 1
    %vm79 = vcmp.gt.s32.totalorder %v78, 0
    %v80 = vsel %vm79, %v78, 0
    %v81 = vshrl.u32 %v80, 5
    %v82 = vand.u32 %v80, 31
    %v83 = vsub.s32 32, %v82
    %v84 = vshrl.u32 683565275, %v83
    %v85 = vshll.u32 683565275, %v82
    %v86 = vshrl.u32 2475754826, %v83
    %v87 = vor.u32 %v85, %v86
    %v88 = vshll.u32 2475754826, %v82
    %v89 = vshrl.u32 2131351028, %v83
    %v90 = vor.u32 %v88, %v89
    %v91 = vshll.u32 2131351028, %v82
    %v92 = vshrl.u32 2102212464, %v83
    %v93 = vor.u32 %v91, %v92
    %v94 = vshll.u32 2102212464, %v82
    %v95 = vshrl.u32 920167782, %v83
    %v96 = vor.u32 %v94, %v95
    %v97 = vshll.u32 920167782, %v82
    %v98 = vshrl.u32 1326507024, %v83
    %v99 = vor.u32 %v97, %v98
    %vm100 = vcmp.lt.s32.totalorder %v81, 1
    %vm101 = vcmp.lt.s32.totalorder %v81, 2
    %vm102 = vcmp.lt.s32.totalorder %v81, 3
    %vm103 = vcmp.lt.s32.totalorder %v81, 4
    %v104 = vsel %vm100, %v84, %v87
    %v105 = vsel %vm103, %v93, 2102212464
    %v106 = vsel %vm102, %v90, %v105
    %v107 = vsel %vm101, %v104, %v106
    %v108 = vsel %vm100, %v87, %v90
    %v109 = vsel %vm103, %v96, 920167782
    %v110 = vsel %vm102, %v93, %v109
    %v111 = vsel %vm101, %v108, %v110
    %v112 = vsel %vm100, %v90, %v93
    %v113 = vsel %vm103, %v99, 1326507024
    %v114 = vsel %vm102, %v96, %v113
    %v115 = vsel %vm101, %v112, %v114
    %v116 = vshll.u32 %v76, 8
    %v117 = vand.u32 %v116, 65535
    %v118 = vshrl.u32 %v116, 16
    %v119 = vand.u32 %v115, 65535
    %v120 = vshrl.u32 %v115, 16
    %v121 = vmul.u32 %v117, %v119
    %v122 = vmul.u32 %v117, %v120
    %v123 = vmul.u32 %v118, %v119
    %v124 = vmul.u32 %v118, %v120
    %v125 = vshll.u32 %v122, 16
    %v126 = vshrl.u32 %v122, 16
    %v127 = vshll.u32 %v123, 16
    %v128 = vshrl.u32 %v123, 16
    %vm129 = vc.u32 %v121, %v125
    %v130 = vsel %vm129, 1, 0
    %v131 = vadd.s32 %v121, %v125
    %v132 = vadd.s32 %v124, %v130
    %vm133 = vc.u32 %v131, %v127
    %v134 = vsel %vm133, 1, 0
    %v135 = vadd.s32 %v131, %v127
    %v136 = vadd.s32 %v132, %v134
    %v137 = vadd.s32 %v136, %v126
    %v138 = vadd.s32 %v137, %v128
    %v139 = vand.u32 %v116, 65535
    %v140 = vshrl.u32 %v116, 16
    %v141 = vand.u32 %v111, 65535
    %v142 = vshrl.u32 %v111, 16
    %v143 = vmul.u32 %v139, %v141
    %v144 = vmul.u32 %v139, %v142
    %v145 = vmul.u32 %v140, %v141
    %v146 = vmul.u32 %v140, %v142
    %v147 = vshll.u32 %v144, 16
    %v148 = vshrl.u32 %v144, 16
    %v149 = vshll.u32 %v145, 16
    %v150 = vshrl.u32 %v145, 16
    %vm151 = vc.u32 %v143, %v147
    %v152 = vsel %vm151, 1, 0
    %v153 = vadd.s32 %v143, %v147
    %v154 = vadd.s32 %v146, %v152
    %vm155 = vc.u32 %v153, %v149
    %v156 = vsel %vm155, 1, 0
    %v157 = vadd.s32 %v153, %v149
    %v158 = vadd.s32 %v154, %v156
    %v159 = vadd.s32 %v158, %v148
    %v160 = vadd.s32 %v159, %v150
    %v161 = vmul.u32 %v116, %v107
    %v162 = vadd.s32 %v138, %v157
    %vm163 = vc.u32 %v138, %v157
    %v164 = vadd.s32 %v160, 1
    %v165 = vsel %vm163, %v164, %v160
    %v166 = vadd.s32 %v161, %v165
    %v167 = vadd.s32 %v166, 536870912
    %v168 = vshrl.u32 %v167, 30
    %v169 = vshll.u32 %v168, 30
    %v170 = vsub.s32 %v166, %v169
    %vm171 = vcmp.lt.s32.totalorder %v170, 0
    %v172 = vsub.s32 0, %v170
    %v173 = vsel %vm171, %v172, %v170
    %v174 = vclz %v173
    %v175 = vsub.s32 %v174, 2
    %vm176 = vcmp.gt.s32.totalorder 0, %v175
    %v177 = vsel %vm176, 0, %v175
    %v178 = vsub.s32 32, %v177
    %v179 = vshll.u32 %v170, %v177
    %v180 = vshrl.u32 %v162, %v178
    %v181 = vor.u32 %v179, %v180
    %v182 = vsub.s32 4294967266, %v177
    %v183 = vadd.s32 %v182, 127
    %v184 = vshll.u32 %v183, 23
    %v185 = vor.u32 4788187, %v184
    %v186 = vand.u32 2147483647, %v185
    %v188 = vcvt.s32.f32 %v181
    %v189 = vmul.f32 %v188, %v186
    %v190 = vxor.u32 %v189, 2147483648
    %v191 = vsel %vm70, %v190, %v189
    %v192 = vsub.s32 4, %v168
    %v193 = vsel %vm70, %v192, %v168
    %v194 = vsel %vm69, %v34, %v191
    %v195 = vsel %vm69, 0, %v193
    %v196 = vmul.f32 %v194, %v194
    %v197 = vmul.f32 %v196, -0.001358992
    %v198 = vadd.f32 %v197, 0.041655596
    %v199 = vmul.f32 %v196, %v198
    %v200 = vadd.f32 %v199, -0.4999988
    %v201 = vmul.f32 %v196, %v200
    %v202 = vadd.f32 1.0, %v201
    %v203 = vmul.f32 %v194, %v194
    %v204 = vmul.f32 %v203, -0.00019511016
    %v205 = vadd.f32 %v204, 0.008332121
    %v206 = vmul.f32 %v203, %v205
    %v207 = vadd.f32 %v206, -0.16666654
    %v208 = vmul.f32 %v203, %v207
    %v209 = vadd.f32 %v208, 1.0
    %v210 = vmul.f32 %v209, %v194
    %vm211 = vweird.f32 %v34
    %v212 = vand.u32 %v195, 3
    %vm213 = vcmp.lt.s32.totalorder %v212, 2
    %vm214 = vcmp.eq.s32.totalorder %v212, 0
    %v215 = vxor.u32 %v210, 2147483648
    %v216 = vsel %vm214, %v202, %v215
    %vm217 = vcmp.eq.s32.totalorder %v212, 2
    %v218 = vxor.u32 %v202, 2147483648
    %v219 = vsel %vm217, %v218, %v210
    %v220 = vsel %vm213, %v216, %v219
    %v221 = vsel %vm211, nan, %v220
    %v222 = vand.u32 2147483647, %v34
    %vm223 = vcmp.le.f32.partialorder %v222, 0.7853982
    %vm224 = vcmp.lt.s32.totalorder %v34, 0
    %v225 = vand.u32 %v34, 2139095040
    %v226 = vshrl.u32 %v225, 23
    %v227 = vsub.s32 %v226, 127
    %v228 = vand.u32 2147483647, %v34
    %v229 = vand.u32 %v228, 8388607
    %v230 = vor.u32 %v229, 8388608
    %v231 = vsub.s32 0, %v230
    %v232 = vadd.s32 %v227, 1
    %vm233 = vcmp.gt.s32.totalorder %v232, 0
    %v234 = vsel %vm233, %v232, 0
    %v235 = vshrl.u32 %v234, 5
    %v236 = vand.u32 %v234, 31
    %v237 = vsub.s32 32, %v236
    %v238 = vshrl.u32 683565275, %v237
    %v239 = vshll.u32 683565275, %v236
    %v240 = vshrl.u32 2475754826, %v237
    %v241 = vor.u32 %v239, %v240
    %v242 = vshll.u32 2475754826, %v236
    %v243 = vshrl.u32 2131351028, %v237
    %v244 = vor.u32 %v242, %v243
    %v245 = vshll.u32 2131351028, %v236
    %v246 = vshrl.u32 2102212464, %v237
    %v247 = vor.u32 %v245, %v246
    %v248 = vshll.u32 2102212464, %v236
    %v249 = vshrl.u32 920167782, %v237
    %v250 = vor.u32 %v248, %v249
    %v251 = vshll.u32 920167782, %v236
    %v252 = vshrl.u32 1326507024, %v237
    %v253 = vor.u32 %v251, %v252
    %vm254 = vcmp.lt.s32.totalorder %v235, 1
    %vm255 = vcmp.lt.s32.totalorder %v235, 2
    %vm256 = vcmp.lt.s32.totalorder %v235, 3
    %vm257 = vcmp.lt.s32.totalorder %v235, 4
    %v258 = vsel %vm254, %v238, %v241
    %v259 = vsel %vm257, %v247, 2102212464
    %v260 = vsel %vm256, %v244, %v259
    %v261 = vsel %vm255, %v258, %v260
    %v262 = vsel %vm254, %v241, %v244
    %v263 = vsel %vm257, %v250, 920167782
    %v264 = vsel %vm256, %v247, %v263
    %v265 = vsel %vm255, %v262, %v264
    %v266 = vsel %vm254, %v244, %v247
    %v267 = vsel %vm257, %v253, 1326507024
    %v268 = vsel %vm256, %v250, %v267
    %v269 = vsel %vm255, %v266, %v268
    %v270 = vshll.u32 %v230, 8
    %v271 = vand.u32 %v270, 65535
    %v272 = vshrl.u32 %v270, 16
    %v273 = vand.u32 %v269, 65535
    %v274 = vshrl.u32 %v269, 16
    %v275 = vmul.u32 %v271, %v273
    %v276 = vmul.u32 %v271, %v274
    %v277 = vmul.u32 %v272, %v273
    %v278 = vmul.u32 %v272, %v274
    %v279 = vshll.u32 %v276, 16
    %v280 = vshrl.u32 %v276, 16
    %v281 = vshll.u32 %v277, 16
    %v282 = vshrl.u32 %v277, 16
    %vm283 = vc.u32 %v275, %v279
    %v284 = vsel %vm283, 1, 0
    %v285 = vadd.s32 %v275, %v279
    %v286 = vadd.s32 %v278, %v284
    %vm287 = vc.u32 %v285, %v281
    %v288 = vsel %vm287, 1, 0
    %v289 = vadd.s32 %v285, %v281
    %v290 = vadd.s32 %v286, %v288
    %v291 = vadd.s32 %v290, %v280
    %v292 = vadd.s32 %v291, %v282
    %v293 = vand.u32 %v270, 65535
    %v294 = vshrl.u32 %v270, 16
    %v295 = vand.u32 %v265, 65535
    %v296 = vshrl.u32 %v265, 16
    %v297 = vmul.u32 %v293, %v295
    %v298 = vmul.u32 %v293, %v296
    %v299 = vmul.u32 %v294, %v295
    %v300 = vmul.u32 %v294, %v296
    %v301 = vshll.u32 %v298, 16
    %v302 = vshrl.u32 %v298, 16
    %v303 = vshll.u32 %v299, 16
    %v304 = vshrl.u32 %v299, 16
    %vm305 = vc.u32 %v297, %v301
    %v306 = vsel %vm305, 1, 0
    %v307 = vadd.s32 %v297, %v301
    %v308 = vadd.s32 %v300, %v306
    %vm309 = vc.u32 %v307, %v303
    %v310 = vsel %vm309, 1, 0
    %v311 = vadd.s32 %v307, %v303
    %v312 = vadd.s32 %v308, %v310
    %v313 = vadd.s32 %v312, %v302
    %v314 = vadd.s32 %v313, %v304
    %v315 = vmul.u32 %v270, %v261
    %v316 = vadd.s32 %v292, %v311
    %vm317 = vc.u32 %v292, %v311
    %v318 = vadd.s32 %v314, 1
    %v319 = vsel %vm317, %v318, %v314
    %v320 = vadd.s32 %v315, %v319
    %v321 = vadd.s32 %v320, 536870912
    %v322 = vshrl.u32 %v321, 30
    %v323 = vshll.u32 %v322, 30
    %v324 = vsub.s32 %v320, %v323
    %vm325 = vcmp.lt.s32.totalorder %v324, 0
    %v326 = vsub.s32 0, %v324
    %v327 = vsel %vm325, %v326, %v324
    %v328 = vclz %v327
    %v329 = vsub.s32 %v328, 2
    %vm330 = vcmp.gt.s32.totalorder 0, %v329
    %v331 = vsel %vm330, 0, %v329
    %v332 = vsub.s32 32, %v331
    %v333 = vshll.u32 %v324, %v331
    %v334 = vshrl.u32 %v316, %v332
    %v335 = vor.u32 %v333, %v334
    %v336 = vsub.s32 4294967266, %v331
    %v337 = vadd.s32 %v336, 127
    %v338 = vshll.u32 %v337, 23
    %v339 = vor.u32 4788187, %v338
    %v340 = vand.u32 2147483647, %v339
    %v342 = vcvt.s32.f32 %v335
    %v343 = vmul.f32 %v342, %v340
    %v344 = vxor.u32 %v343, 2147483648
    %v345 = vsel %vm224, %v344, %v343
    %v346 = vsub.s32 4, %v322
    %v347 = vsel %vm224, %v346, %v322
    %v348 = vsel %vm223, %v34, %v345
    %v349 = vsel %vm223, 0, %v347
    %v350 = vmul.f32 %v348, %v348
    %v351 = vmul.f32 %v350, -0.001358992
    %v352 = vadd.f32 %v351, 0.041655596
    %v353 = vmul.f32 %v350, %v352
    %v354 = vadd.f32 %v353, -0.4999988
    %v355 = vmul.f32 %v350, %v354
    %v356 = vadd.f32 1.0, %v355
    %v357 = vmul.f32 %v348, %v348
    %v358 = vmul.f32 %v357, -0.00019511016
    %v359 = vadd.f32 %v358, 0.008332121
    %v360 = vmul.f32 %v357, %v359
    %v361 = vadd.f32 %v360, -0.16666654
    %v362 = vmul.f32 %v357, %v361
    %v363 = vadd.f32 %v362, 1.0
    %v364 = vmul.f32 %v363, %v348
    %vm365 = vweird.f32 %v34
    %v366 = vadd.s32 %v349, 3
    %v367 = vand.u32 %v366, 3
    %vm368 = vcmp.lt.s32.totalorder %v367, 2
    %vm369 = vcmp.eq.s32.totalorder %v367, 0
    %v370 = vxor.u32 %v364, 2147483648
    %v371 = vsel %vm369, %v356, %v370
    %vm372 = vcmp.eq.s32.totalorder %v367, 2
    %v373 = vxor.u32 %v356, 2147483648
    %v374 = vsel %vm372, %v373, %v364
    %v375 = vsel %vm368, %v371, %v374
    %v376 = vsel %vm365, nan, %v375
    %v377 = vmul.f32 %v376, 2.0
    %v378 = vmul.f32 %v377, %v221
    %v379 = vmul.f32 %v377, %v376
    %v380 = vsub.f32 1.0, %v379
    %v383 = vrot.slane %v376, 7
    %v384 = vrot.slane 0.0, 7
    %v388 = vrot.slane 0.0, 6
    %v389 = vrot.slane %v380, 6
    %v393 = vrot.slane 0.0, 5
    %v394 = vrot.slane %v378, 5
    %vm397 = vcmask 1040384
    %v398 = vsel %vm397, %v221, %v383
    %v399 = vsel %vm397, 0.0, %v384
    %vm400 = vcmask 1041408
    %v401 = vsel %vm400, %v398, %v388
    %v402 = vsel %vm400, %v399, %v389
    %vm403 = vcmask 1042432
    %v404 = vsel %vm403, %v401, %v393
    %v405 = vsel %vm403, %v402, %v394
    %406 = vmatpush.msra.mxu0 %v51
    %407 = vmatpush.msra.mxu0 %v50
    %408 = vmatpush.msra.mxu0 %v49
    %409 = vmatpush.msra.mxu0 %v48
    %410 = vmatpush.msra.mxu0 %v47
    %411 = vmatpush.msra.mxu0 %v46
    %412 = vmatpush.msra.mxu0 %v45
    %413 = vmatpush.msra.mxu0 %v44
    %414 = vmatpush.msra.mxu0 %v43
    %415 = vmatpush.msra.mxu0 %v42
    %416 = vmatpush.msra.mxu0 %v41
    %417 = vmatpush.msra.mxu0 %v40
    %418 = vmatpush.msra.mxu0 %v39
    %419 = vmatpush.msra.mxu0 %v38
    %420 = vmatpush.msra.mxu0 %v37
    %421 = vmatpush.msra.mxu0 %v36
    %422 = vmatmul.f32.gmra.mxu0 %v404
    %v423 = vpop.f32.mrf.mxu0
    %v424 = vadd.f32 0.0, %v423
    %425 = vdwg.mxu0
    %426 = vmatpush.msra.mxu0 %v67
    %427 = vmatpush.msra.mxu0 %v66
    %428 = vmatpush.msra.mxu0 %v65
    %429 = vmatpush.msra.mxu0 %v64
    %430 = vmatpush.msra.mxu0 %v63
    %431 = vmatpush.msra.mxu0 %v62
    %432 = vmatpush.msra.mxu0 %v61
    %433 = vmatpush.msra.mxu0 %v60
    %434 = vmatpush.msra.mxu0 %v59
    %435 = vmatpush.msra.mxu0 %v58
    %436 = vmatpush.msra.mxu0 %v57
    %437 = vmatpush.msra.mxu0 %v56
    %438 = vmatpush.msra.mxu0 %v55
    %439 = vmatpush.msra.mxu0 %v54
    %440 = vmatpush.msra.mxu0 %v53
    %441 = vmatpush.msra.mxu0 %v52
    %442 = vmatmul.f32.gmra.mxu0 %v405
    %v443 = vpop.f32.mrf.mxu0
    %v444 = vadd.f32 %v424, %v443
    %445 = vdwg.mxu0
    %v446 = vsub.f32 0.0, %v221
    %v447 = vsub.f32 0.0, %v380
    %v449 = vperm.slane %v446, 0
    %v451 = vperm.slane %v378, 0
    %v454 = vperm.slane %v447, 0
    %v456 = vsel %vm397, %v376, %v449
    %v457 = vsel %vm400, %v456, %v451
    %v458 = vsel %vm403, %v457, %v454
    %v459 = vmul.f32 %v458, %v444
    %vm460 = vcmask 1043456
    %v461 = vsel %vm460, %v459, 0.0
    %v462 = vrot.slane %v461, 4
    %v463 = vadd.f32 %v461, %v462
    %v464 = vrot.slane %v463, 2
    %v465 = vadd.f32 %v463, %v464
    %v466 = vrot.slane %v465, 1
    %v467 = vadd.f32 %v465, %v466
    %v468 = vsub.f32 %v35, %v467
    %v469 = vmul.f32 %v468, 0.01
    %v470 = vmul.f32 %v469, 0.5
    %v471 = vadd.f32 %v34, %v470
    %v472 = vand.u32 2147483647, %v471
    %vm473 = vcmp.le.f32.partialorder %v472, 0.7853982
    %vm474 = vcmp.lt.s32.totalorder %v471, 0
    %v475 = vand.u32 %v471, 2139095040
    %v476 = vshrl.u32 %v475, 23
    %v477 = vsub.s32 %v476, 127
    %v478 = vand.u32 2147483647, %v471
    %v479 = vand.u32 %v478, 8388607
    %v480 = vor.u32 %v479, 8388608
    %v481 = vsub.s32 0, %v480
    %v482 = vadd.s32 %v477, 1
    %vm483 = vcmp.gt.s32.totalorder %v482, 0
    %v484 = vsel %vm483, %v482, 0
    %v485 = vshrl.u32 %v484, 5
    %v486 = vand.u32 %v484, 31
    %v487 = vsub.s32 32, %v486
    %v488 = vshrl.u32 683565275, %v487
    %v489 = vshll.u32 683565275, %v486
    %v490 = vshrl.u32 2475754826, %v487
    %v491 = vor.u32 %v489, %v490
    %v492 = vshll.u32 2475754826, %v486
    %v493 = vshrl.u32 2131351028, %v487
    %v494 = vor.u32 %v492, %v493
    %v495 = vshll.u32 2131351028, %v486
    %v496 = vshrl.u32 2102212464, %v487
    %v497 = vor.u32 %v495, %v496
    %v498 = vshll.u32 2102212464, %v486
    %v499 = vshrl.u32 920167782, %v487
    %v500 = vor.u32 %v498, %v499
    %v501 = vshll.u32 920167782, %v486
    %v502 = vshrl.u32 1326507024, %v487
    %v503 = vor.u32 %v501, %v502
    %vm504 = vcmp.lt.s32.totalorder %v485, 1
    %vm505 = vcmp.lt.s32.totalorder %v485, 2
    %vm506 = vcmp.lt.s32.totalorder %v485, 3
    %vm507 = vcmp.lt.s32.totalorder %v485, 4
    %v508 = vsel %vm504, %v488, %v491
    %v509 = vsel %vm507, %v497, 2102212464
    %v510 = vsel %vm506, %v494, %v509
    %v511 = vsel %vm505, %v508, %v510
    %v512 = vsel %vm504, %v491, %v494
    %v513 = vsel %vm507, %v500, 920167782
    %v514 = vsel %vm506, %v497, %v513
    %v515 = vsel %vm505, %v512, %v514
    %v516 = vsel %vm504, %v494, %v497
    %v517 = vsel %vm507, %v503, 1326507024
    %v518 = vsel %vm506, %v500, %v517
    %v519 = vsel %vm505, %v516, %v518
    %v520 = vshll.u32 %v480, 8
    %v521 = vand.u32 %v520, 65535
    %v522 = vshrl.u32 %v520, 16
    %v523 = vand.u32 %v519, 65535
    %v524 = vshrl.u32 %v519, 16
    %v525 = vmul.u32 %v521, %v523
    %v526 = vmul.u32 %v521, %v524
    %v527 = vmul.u32 %v522, %v523
    %v528 = vmul.u32 %v522, %v524
    %v529 = vshll.u32 %v526, 16
    %v530 = vshrl.u32 %v526, 16
    %v531 = vshll.u32 %v527, 16
    %v532 = vshrl.u32 %v527, 16
    %vm533 = vc.u32 %v525, %v529
    %v534 = vsel %vm533, 1, 0
    %v535 = vadd.s32 %v525, %v529
    %v536 = vadd.s32 %v528, %v534
    %vm537 = vc.u32 %v535, %v531
    %v538 = vsel %vm537, 1, 0
    %v539 = vadd.s32 %v535, %v531
    %v540 = vadd.s32 %v536, %v538
    %v541 = vadd.s32 %v540, %v530
    %v542 = vadd.s32 %v541, %v532
    %v543 = vand.u32 %v520, 65535
    %v544 = vshrl.u32 %v520, 16
    %v545 = vand.u32 %v515, 65535
    %v546 = vshrl.u32 %v515, 16
    %v547 = vmul.u32 %v543, %v545
    %v548 = vmul.u32 %v543, %v546
    %v549 = vmul.u32 %v544, %v545
    %v550 = vmul.u32 %v544, %v546
    %v551 = vshll.u32 %v548, 16
    %v552 = vshrl.u32 %v548, 16
    %v553 = vshll.u32 %v549, 16
    %v554 = vshrl.u32 %v549, 16
    %vm555 = vc.u32 %v547, %v551
    %v556 = vsel %vm555, 1, 0
    %v557 = vadd.s32 %v547, %v551
    %v558 = vadd.s32 %v550, %v556
    %vm559 = vc.u32 %v557, %v553
    %v560 = vsel %vm559, 1, 0
    %v561 = vadd.s32 %v557, %v553
    %v562 = vadd.s32 %v558, %v560
    %v563 = vadd.s32 %v562, %v552
    %v564 = vadd.s32 %v563, %v554
    %v565 = vmul.u32 %v520, %v511
    %v566 = vadd.s32 %v542, %v561
    %vm567 = vc.u32 %v542, %v561
    %v568 = vadd.s32 %v564, 1
    %v569 = vsel %vm567, %v568, %v564
    %v570 = vadd.s32 %v565, %v569
    %v571 = vadd.s32 %v570, 536870912
    %v572 = vshrl.u32 %v571, 30
    %v573 = vshll.u32 %v572, 30
    %v574 = vsub.s32 %v570, %v573
    %vm575 = vcmp.lt.s32.totalorder %v574, 0
    %v576 = vsub.s32 0, %v574
    %v577 = vsel %vm575, %v576, %v574
    %v578 = vclz %v577
    %v579 = vsub.s32 %v578, 2
    %vm580 = vcmp.gt.s32.totalorder 0, %v579
    %v581 = vsel %vm580, 0, %v579
    %v582 = vsub.s32 32, %v581
    %v583 = vshll.u32 %v574, %v581
    %v584 = vshrl.u32 %v566, %v582
    %v585 = vor.u32 %v583, %v584
    %v586 = vsub.s32 4294967266, %v581
    %v587 = vadd.s32 %v586, 127
    %v588 = vshll.u32 %v587, 23
    %v589 = vor.u32 4788187, %v588
    %v590 = vand.u32 2147483647, %v589
    %v592 = vcvt.s32.f32 %v585
    %v593 = vmul.f32 %v592, %v590
    %v594 = vxor.u32 %v593, 2147483648
    %v595 = vsel %vm474, %v594, %v593
    %v596 = vsub.s32 4, %v572
    %v597 = vsel %vm474, %v596, %v572
    %v598 = vsel %vm473, %v471, %v595
    %v599 = vsel %vm473, 0, %v597
    %v600 = vmul.f32 %v598, %v598
    %v601 = vmul.f32 %v600, -0.001358992
    %v602 = vadd.f32 %v601, 0.041655596
    %v603 = vmul.f32 %v600, %v602
    %v604 = vadd.f32 %v603, -0.4999988
    %v605 = vmul.f32 %v600, %v604
    %v606 = vadd.f32 1.0, %v605
    %v607 = vmul.f32 %v598, %v598
    %v608 = vmul.f32 %v607, -0.00019511016
    %v609 = vadd.f32 %v608, 0.008332121
    %v610 = vmul.f32 %v607, %v609
    %v611 = vadd.f32 %v610, -0.16666654
    %v612 = vmul.f32 %v607, %v611
    %v613 = vadd.f32 %v612, 1.0
    %v614 = vmul.f32 %v613, %v598
    %vm615 = vweird.f32 %v471
    %v616 = vand.u32 %v599, 3
    %vm617 = vcmp.lt.s32.totalorder %v616, 2
    %vm618 = vcmp.eq.s32.totalorder %v616, 0
    %v619 = vxor.u32 %v614, 2147483648
    %v620 = vsel %vm618, %v606, %v619
    %vm621 = vcmp.eq.s32.totalorder %v616, 2
    %v622 = vxor.u32 %v606, 2147483648
    %v623 = vsel %vm621, %v622, %v614
    %v624 = vsel %vm617, %v620, %v623
    %v625 = vsel %vm615, nan, %v624
    %v626 = vand.u32 2147483647, %v471
    %vm627 = vcmp.le.f32.partialorder %v626, 0.7853982
    %vm628 = vcmp.lt.s32.totalorder %v471, 0
    %v629 = vand.u32 %v471, 2139095040
    %v630 = vshrl.u32 %v629, 23
    %v631 = vsub.s32 %v630, 127
    %v632 = vand.u32 2147483647, %v471
    %v633 = vand.u32 %v632, 8388607
    %v634 = vor.u32 %v633, 8388608
    %v635 = vsub.s32 0, %v634
    %v636 = vadd.s32 %v631, 1
    %vm637 = vcmp.gt.s32.totalorder %v636, 0
    %v638 = vsel %vm637, %v636, 0
    %v639 = vshrl.u32 %v638, 5
    %v640 = vand.u32 %v638, 31
    %v641 = vsub.s32 32, %v640
    %v642 = vshrl.u32 683565275, %v641
    %v643 = vshll.u32 683565275, %v640
    %v644 = vshrl.u32 2475754826, %v641
    %v645 = vor.u32 %v643, %v644
    %v646 = vshll.u32 2475754826, %v640
    %v647 = vshrl.u32 2131351028, %v641
    %v648 = vor.u32 %v646, %v647
    %v649 = vshll.u32 2131351028, %v640
    %v650 = vshrl.u32 2102212464, %v641
    %v651 = vor.u32 %v649, %v650
    %v652 = vshll.u32 2102212464, %v640
    %v653 = vshrl.u32 920167782, %v641
    %v654 = vor.u32 %v652, %v653
    %v655 = vshll.u32 920167782, %v640
    %v656 = vshrl.u32 1326507024, %v641
    %v657 = vor.u32 %v655, %v656
    %vm658 = vcmp.lt.s32.totalorder %v639, 1
    %vm659 = vcmp.lt.s32.totalorder %v639, 2
    %vm660 = vcmp.lt.s32.totalorder %v639, 3
    %vm661 = vcmp.lt.s32.totalorder %v639, 4
    %v662 = vsel %vm658, %v642, %v645
    %v663 = vsel %vm661, %v651, 2102212464
    %v664 = vsel %vm660, %v648, %v663
    %v665 = vsel %vm659, %v662, %v664
    %v666 = vsel %vm658, %v645, %v648
    %v667 = vsel %vm661, %v654, 920167782
    %v668 = vsel %vm660, %v651, %v667
    %v669 = vsel %vm659, %v666, %v668
    %v670 = vsel %vm658, %v648, %v651
    %v671 = vsel %vm661, %v657, 1326507024
    %v672 = vsel %vm660, %v654, %v671
    %v673 = vsel %vm659, %v670, %v672
    %v674 = vshll.u32 %v634, 8
    %v675 = vand.u32 %v674, 65535
    %v676 = vshrl.u32 %v674, 16
    %v677 = vand.u32 %v673, 65535
    %v678 = vshrl.u32 %v673, 16
    %v679 = vmul.u32 %v675, %v677
    %v680 = vmul.u32 %v675, %v678
    %v681 = vmul.u32 %v676, %v677
    %v682 = vmul.u32 %v676, %v678
    %v683 = vshll.u32 %v680, 16
    %v684 = vshrl.u32 %v680, 16
    %v685 = vshll.u32 %v681, 16
    %v686 = vshrl.u32 %v681, 16
    %vm687 = vc.u32 %v679, %v683
    %v688 = vsel %vm687, 1, 0
    %v689 = vadd.s32 %v679, %v683
    %v690 = vadd.s32 %v682, %v688
    %vm691 = vc.u32 %v689, %v685
    %v692 = vsel %vm691, 1, 0
    %v693 = vadd.s32 %v689, %v685
    %v694 = vadd.s32 %v690, %v692
    %v695 = vadd.s32 %v694, %v684
    %v696 = vadd.s32 %v695, %v686
    %v697 = vand.u32 %v674, 65535
    %v698 = vshrl.u32 %v674, 16
    %v699 = vand.u32 %v669, 65535
    %v700 = vshrl.u32 %v669, 16
    %v701 = vmul.u32 %v697, %v699
    %v702 = vmul.u32 %v697, %v700
    %v703 = vmul.u32 %v698, %v699
    %v704 = vmul.u32 %v698, %v700
    %v705 = vshll.u32 %v702, 16
    %v706 = vshrl.u32 %v702, 16
    %v707 = vshll.u32 %v703, 16
    %v708 = vshrl.u32 %v703, 16
    %vm709 = vc.u32 %v701, %v705
    %v710 = vsel %vm709, 1, 0
    %v711 = vadd.s32 %v701, %v705
    %v712 = vadd.s32 %v704, %v710
    %vm713 = vc.u32 %v711, %v707
    %v714 = vsel %vm713, 1, 0
    %v715 = vadd.s32 %v711, %v707
    %v716 = vadd.s32 %v712, %v714
    %v717 = vadd.s32 %v716, %v706
    %v718 = vadd.s32 %v717, %v708
    %v719 = vmul.u32 %v674, %v665
    %v720 = vadd.s32 %v696, %v715
    %vm721 = vc.u32 %v696, %v715
    %v722 = vadd.s32 %v718, 1
    %v723 = vsel %vm721, %v722, %v718
    %v724 = vadd.s32 %v719, %v723
    %v725 = vadd.s32 %v724, 536870912
    %v726 = vshrl.u32 %v725, 30
    %v727 = vshll.u32 %v726, 30
    %v728 = vsub.s32 %v724, %v727
    %vm729 = vcmp.lt.s32.totalorder %v728, 0
    %v730 = vsub.s32 0, %v728
    %v731 = vsel %vm729, %v730, %v728
    %v732 = vclz %v731
    %v733 = vsub.s32 %v732, 2
    %vm734 = vcmp.gt.s32.totalorder 0, %v733
    %v735 = vsel %vm734, 0, %v733
    %v736 = vsub.s32 32, %v735
    %v737 = vshll.u32 %v728, %v735
    %v738 = vshrl.u32 %v720, %v736
    %v739 = vor.u32 %v737, %v738
    %v740 = vsub.s32 4294967266, %v735
    %v741 = vadd.s32 %v740, 127
    %v742 = vshll.u32 %v741, 23
    %v743 = vor.u32 4788187, %v742
    %v744 = vand.u32 2147483647, %v743
    %v746 = vcvt.s32.f32 %v739
    %v747 = vmul.f32 %v746, %v744
    %v748 = vxor.u32 %v747, 2147483648
    %v749 = vsel %vm628, %v748, %v747
    %v750 = vsub.s32 4, %v726
    %v751 = vsel %vm628, %v750, %v726
    %v752 = vsel %vm627, %v471, %v749
    %v753 = vsel %vm627, 0, %v751
    %v754 = vmul.f32 %v752, %v752
    %v755 = vmul.f32 %v754, -0.001358992
    %v756 = vadd.f32 %v755, 0.041655596
    %v757 = vmul.f32 %v754, %v756
    %v758 = vadd.f32 %v757, -0.4999988
    %v759 = vmul.f32 %v754, %v758
    %v760 = vadd.f32 1.0, %v759
    %v761 = vmul.f32 %v752, %v752
    %v762 = vmul.f32 %v761, -0.00019511016
    %v763 = vadd.f32 %v762, 0.008332121
    %v764 = vmul.f32 %v761, %v763
    %v765 = vadd.f32 %v764, -0.16666654
    %v766 = vmul.f32 %v761, %v765
    %v767 = vadd.f32 %v766, 1.0
    %v768 = vmul.f32 %v767, %v752
    %vm769 = vweird.f32 %v471
    %v770 = vadd.s32 %v753, 3
    %v771 = vand.u32 %v770, 3
    %vm772 = vcmp.lt.s32.totalorder %v771, 2
    %vm773 = vcmp.eq.s32.totalorder %v771, 0
    %v774 = vxor.u32 %v768, 2147483648
    %v775 = vsel %vm773, %v760, %v774
    %vm776 = vcmp.eq.s32.totalorder %v771, 2
    %v777 = vxor.u32 %v760, 2147483648
    %v778 = vsel %vm776, %v777, %v768
    %v779 = vsel %vm772, %v775, %v778
    %v780 = vsel %vm769, nan, %v779
    %v781 = vmul.f32 %v780, 2.0
    %v782 = vmul.f32 %v781, %v625
    %v783 = vmul.f32 %v781, %v780
    %v784 = vsub.f32 1.0, %v783
    %v786 = vrot.slane %v780, 7
    %v789 = vrot.slane %v784, 6
    %v792 = vrot.slane %v782, 5
    %v794 = vsel %vm397, %v625, %v786
    %v795 = vsel %vm400, %v794, %v388
    %v796 = vsel %vm400, %v399, %v789
    %v797 = vsel %vm403, %v795, %v393
    %v798 = vsel %vm403, %v796, %v792
    %799 = vmatpush.msra.mxu0 %v51
    %800 = vmatpush.msra.mxu0 %v50
    %801 = vmatpush.msra.mxu0 %v49
    %802 = vmatpush.msra.mxu0 %v48
    %803 = vmatpush.msra.mxu0 %v47
    %804 = vmatpush.msra.mxu0 %v46
    %805 = vmatpush.msra.mxu0 %v45
    %806 = vmatpush.msra.mxu0 %v44
    %807 = vmatpush.msra.mxu0 %v43
    %808 = vmatpush.msra.mxu0 %v42
    %809 = vmatpush.msra.mxu0 %v41
    %810 = vmatpush.msra.mxu0 %v40
    %811 = vmatpush.msra.mxu0 %v39
    %812 = vmatpush.msra.mxu0 %v38
    %813 = vmatpush.msra.mxu0 %v37
    %814 = vmatpush.msra.mxu0 %v36
    %815 = vmatmul.f32.gmra.mxu0 %v797
    %v816 = vpop.f32.mrf.mxu0
    %v817 = vadd.f32 0.0, %v816
    %818 = vdwg.mxu0
    %819 = vmatpush.msra.mxu0 %v67
    %820 = vmatpush.msra.mxu0 %v66
    %821 = vmatpush.msra.mxu0 %v65
    %822 = vmatpush.msra.mxu0 %v64
    %823 = vmatpush.msra.mxu0 %v63
    %824 = vmatpush.msra.mxu0 %v62
    %825 = vmatpush.msra.mxu0 %v61
    %826 = vmatpush.msra.mxu0 %v60
    %827 = vmatpush.msra.mxu0 %v59
    %828 = vmatpush.msra.mxu0 %v58
    %829 = vmatpush.msra.mxu0 %v57
    %830 = vmatpush.msra.mxu0 %v56
    %831 = vmatpush.msra.mxu0 %v55
    %832 = vmatpush.msra.mxu0 %v54
    %833 = vmatpush.msra.mxu0 %v53
    %834 = vmatpush.msra.mxu0 %v52
    %835 = vmatmul.f32.gmra.mxu0 %v798
    %v836 = vpop.f32.mrf.mxu0
    %v837 = vadd.f32 %v817, %v836
    %838 = vdwg.mxu0
    %v839 = vsub.f32 0.0, %v625
    %v840 = vsub.f32 0.0, %v784
    %v842 = vperm.slane %v839, 0
    %v844 = vperm.slane %v782, 0
    %v847 = vperm.slane %v840, 0
    %v849 = vsel %vm397, %v780, %v842
    %v850 = vsel %vm400, %v849, %v844
    %v851 = vsel %vm403, %v850, %v847
    %v852 = vmul.f32 %v851, %v837
    %v853 = vsel %vm460, %v852, 0.0
    %v854 = vrot.slane %v853, 4
    %v855 = vadd.f32 %v853, %v854
    %v856 = vrot.slane %v855, 2
    %v857 = vadd.f32 %v855, %v856
    %v858 = vrot.slane %v857, 1
    %v859 = vadd.f32 %v857, %v858
    %v860 = vsub.f32 %v35, %v859
    %v861 = vmul.f32 %v860, 0.01
    %v862 = vmul.f32 %v861, 0.5
    %v863 = vadd.f32 %v34, %v862
    %v864 = vand.u32 2147483647, %v863
    %vm865 = vcmp.le.f32.partialorder %v864, 0.7853982
    %vm866 = vcmp.lt.s32.totalorder %v863, 0
    %v867 = vand.u32 %v863, 2139095040
    %v868 = vshrl.u32 %v867, 23
    %v869 = vsub.s32 %v868, 127
    %v870 = vand.u32 2147483647, %v863
    %v871 = vand.u32 %v870, 8388607
    %v872 = vor.u32 %v871, 8388608
    %v873 = vsub.s32 0, %v872
    %v874 = vadd.s32 %v869, 1
    %vm875 = vcmp.gt.s32.totalorder %v874, 0
    %v876 = vsel %vm875, %v874, 0
    %v877 = vshrl.u32 %v876, 5
    %v878 = vand.u32 %v876, 31
    %v879 = vsub.s32 32, %v878
    %v880 = vshrl.u32 683565275, %v879
    %v881 = vshll.u32 683565275, %v878
    %v882 = vshrl.u32 2475754826, %v879
    %v883 = vor.u32 %v881, %v882
    %v884 = vshll.u32 2475754826, %v878
    %v885 = vshrl.u32 2131351028, %v879
    %v886 = vor.u32 %v884, %v885
    %v887 = vshll.u32 2131351028, %v878
    %v888 = vshrl.u32 2102212464, %v879
    %v889 = vor.u32 %v887, %v888
    %v890 = vshll.u32 2102212464, %v878
    %v891 = vshrl.u32 920167782, %v879
    %v892 = vor.u32 %v890, %v891
    %v893 = vshll.u32 920167782, %v878
    %v894 = vshrl.u32 1326507024, %v879
    %v895 = vor.u32 %v893, %v894
    %vm896 = vcmp.lt.s32.totalorder %v877, 1
    %vm897 = vcmp.lt.s32.totalorder %v877, 2
    %vm898 = vcmp.lt.s32.totalorder %v877, 3
    %vm899 = vcmp.lt.s32.totalorder %v877, 4
    %v900 = vsel %vm896, %v880, %v883
    %v901 = vsel %vm899, %v889, 2102212464
    %v902 = vsel %vm898, %v886, %v901
    %v903 = vsel %vm897, %v900, %v902
    %v904 = vsel %vm896, %v883, %v886
    %v905 = vsel %vm899, %v892, 920167782
    %v906 = vsel %vm898, %v889, %v905
    %v907 = vsel %vm897, %v904, %v906
    %v908 = vsel %vm896, %v886, %v889
    %v909 = vsel %vm899, %v895, 1326507024
    %v910 = vsel %vm898, %v892, %v909
    %v911 = vsel %vm897, %v908, %v910
    %v912 = vshll.u32 %v872, 8
    %v913 = vand.u32 %v912, 65535
    %v914 = vshrl.u32 %v912, 16
    %v915 = vand.u32 %v911, 65535
    %v916 = vshrl.u32 %v911, 16
    %v917 = vmul.u32 %v913, %v915
    %v918 = vmul.u32 %v913, %v916
    %v919 = vmul.u32 %v914, %v915
    %v920 = vmul.u32 %v914, %v916
    %v921 = vshll.u32 %v918, 16
    %v922 = vshrl.u32 %v918, 16
    %v923 = vshll.u32 %v919, 16
    %v924 = vshrl.u32 %v919, 16
    %vm925 = vc.u32 %v917, %v921
    %v926 = vsel %vm925, 1, 0
    %v927 = vadd.s32 %v917, %v921
    %v928 = vadd.s32 %v920, %v926
    %vm929 = vc.u32 %v927, %v923
    %v930 = vsel %vm929, 1, 0
    %v931 = vadd.s32 %v927, %v923
    %v932 = vadd.s32 %v928, %v930
    %v933 = vadd.s32 %v932, %v922
    %v934 = vadd.s32 %v933, %v924
    %v935 = vand.u32 %v912, 65535
    %v936 = vshrl.u32 %v912, 16
    %v937 = vand.u32 %v907, 65535
    %v938 = vshrl.u32 %v907, 16
    %v939 = vmul.u32 %v935, %v937
    %v940 = vmul.u32 %v935, %v938
    %v941 = vmul.u32 %v936, %v937
    %v942 = vmul.u32 %v936, %v938
    %v943 = vshll.u32 %v940, 16
    %v944 = vshrl.u32 %v940, 16
    %v945 = vshll.u32 %v941, 16
    %v946 = vshrl.u32 %v941, 16
    %vm947 = vc.u32 %v939, %v943
    %v948 = vsel %vm947, 1, 0
    %v949 = vadd.s32 %v939, %v943
    %v950 = vadd.s32 %v942, %v948
    %vm951 = vc.u32 %v949, %v945
    %v952 = vsel %vm951, 1, 0
    %v953 = vadd.s32 %v949, %v945
    %v954 = vadd.s32 %v950, %v952
    %v955 = vadd.s32 %v954, %v944
    %v956 = vadd.s32 %v955, %v946
    %v957 = vmul.u32 %v912, %v903
    %v958 = vadd.s32 %v934, %v953
    %vm959 = vc.u32 %v934, %v953
    %v960 = vadd.s32 %v956, 1
    %v961 = vsel %vm959, %v960, %v956
    %v962 = vadd.s32 %v957, %v961
    %v963 = vadd.s32 %v962, 536870912
    %v964 = vshrl.u32 %v963, 30
    %v965 = vshll.u32 %v964, 30
    %v966 = vsub.s32 %v962, %v965
    %vm967 = vcmp.lt.s32.totalorder %v966, 0
    %v968 = vsub.s32 0, %v966
    %v969 = vsel %vm967, %v968, %v966
    %v970 = vclz %v969
    %v971 = vsub.s32 %v970, 2
    %vm972 = vcmp.gt.s32.totalorder 0, %v971
    %v973 = vsel %vm972, 0, %v971
    %v974 = vsub.s32 32, %v973
    %v975 = vshll.u32 %v966, %v973
    %v976 = vshrl.u32 %v958, %v974
    %v977 = vor.u32 %v975, %v976
    %v978 = vsub.s32 4294967266, %v973
    %v979 = vadd.s32 %v978, 127
    %v980 = vshll.u32 %v979, 23
    %v981 = vor.u32 4788187, %v980
    %v982 = vand.u32 2147483647, %v981
    %v984 = vcvt.s32.f32 %v977
    %v985 = vmul.f32 %v984, %v982
    %v986 = vxor.u32 %v985, 2147483648
    %v987 = vsel %vm866, %v986, %v985
    %v988 = vsub.s32 4, %v964
    %v989 = vsel %vm866, %v988, %v964
    %v990 = vsel %vm865, %v863, %v987
    %v991 = vsel %vm865, 0, %v989
    %v992 = vmul.f32 %v990, %v990
    %v993 = vmul.f32 %v992, -0.001358992
    %v994 = vadd.f32 %v993, 0.041655596
    %v995 = vmul.f32 %v992, %v994
    %v996 = vadd.f32 %v995, -0.4999988
    %v997 = vmul.f32 %v992, %v996
    %v998 = vadd.f32 1.0, %v997
    %v999 = vmul.f32 %v990, %v990
    %v1000 = vmul.f32 %v999, -0.00019511016
    %v1001 = vadd.f32 %v1000, 0.008332121
    %v1002 = vmul.f32 %v999, %v1001
    %v1003 = vadd.f32 %v1002, -0.16666654
    %v1004 = vmul.f32 %v999, %v1003
    %v1005 = vadd.f32 %v1004, 1.0
    %v1006 = vmul.f32 %v1005, %v990
    %vm1007 = vweird.f32 %v863
    %v1008 = vand.u32 %v991, 3
    %vm1009 = vcmp.lt.s32.totalorder %v1008, 2
    %vm1010 = vcmp.eq.s32.totalorder %v1008, 0
    %v1011 = vxor.u32 %v1006, 2147483648
    %v1012 = vsel %vm1010, %v998, %v1011
    %vm1013 = vcmp.eq.s32.totalorder %v1008, 2
    %v1014 = vxor.u32 %v998, 2147483648
    %v1015 = vsel %vm1013, %v1014, %v1006
    %v1016 = vsel %vm1009, %v1012, %v1015
    %v1017 = vsel %vm1007, nan, %v1016
    %v1018 = vand.u32 2147483647, %v863
    %vm1019 = vcmp.le.f32.partialorder %v1018, 0.7853982
    %vm1020 = vcmp.lt.s32.totalorder %v863, 0
    %v1021 = vand.u32 %v863, 2139095040
    %v1022 = vshrl.u32 %v1021, 23
    %v1023 = vsub.s32 %v1022, 127
    %v1024 = vand.u32 2147483647, %v863
    %v1025 = vand.u32 %v1024, 8388607
    %v1026 = vor.u32 %v1025, 8388608
    %v1027 = vsub.s32 0, %v1026
    %v1028 = vadd.s32 %v1023, 1
    %vm1029 = vcmp.gt.s32.totalorder %v1028, 0
    %v1030 = vsel %vm1029, %v1028, 0
    %v1031 = vshrl.u32 %v1030, 5
    %v1032 = vand.u32 %v1030, 31
    %v1033 = vsub.s32 32, %v1032
    %v1034 = vshrl.u32 683565275, %v1033
    %v1035 = vshll.u32 683565275, %v1032
    %v1036 = vshrl.u32 2475754826, %v1033
    %v1037 = vor.u32 %v1035, %v1036
    %v1038 = vshll.u32 2475754826, %v1032
    %v1039 = vshrl.u32 2131351028, %v1033
    %v1040 = vor.u32 %v1038, %v1039
    %v1041 = vshll.u32 2131351028, %v1032
    %v1042 = vshrl.u32 2102212464, %v1033
    %v1043 = vor.u32 %v1041, %v1042
    %v1044 = vshll.u32 2102212464, %v1032
    %v1045 = vshrl.u32 920167782, %v1033
    %v1046 = vor.u32 %v1044, %v1045
    %v1047 = vshll.u32 920167782, %v1032
    %v1048 = vshrl.u32 1326507024, %v1033
    %v1049 = vor.u32 %v1047, %v1048
    %vm1050 = vcmp.lt.s32.totalorder %v1031, 1
    %vm1051 = vcmp.lt.s32.totalorder %v1031, 2
    %vm1052 = vcmp.lt.s32.totalorder %v1031, 3
    %vm1053 = vcmp.lt.s32.totalorder %v1031, 4
    %v1054 = vsel %vm1050, %v1034, %v1037
    %v1055 = vsel %vm1053, %v1043, 2102212464
    %v1056 = vsel %vm1052, %v1040, %v1055
    %v1057 = vsel %vm1051, %v1054, %v1056
    %v1058 = vsel %vm1050, %v1037, %v1040
    %v1059 = vsel %vm1053, %v1046, 920167782
    %v1060 = vsel %vm1052, %v1043, %v1059
    %v1061 = vsel %vm1051, %v1058, %v1060
    %v1062 = vsel %vm1050, %v1040, %v1043
    %v1063 = vsel %vm1053, %v1049, 1326507024
    %v1064 = vsel %vm1052, %v1046, %v1063
    %v1065 = vsel %vm1051, %v1062, %v1064
    %v1066 = vshll.u32 %v1026, 8
    %v1067 = vand.u32 %v1066, 65535
    %v1068 = vshrl.u32 %v1066, 16
    %v1069 = vand.u32 %v1065, 65535
    %v1070 = vshrl.u32 %v1065, 16
    %v1071 = vmul.u32 %v1067, %v1069
    %v1072 = vmul.u32 %v1067, %v1070
    %v1073 = vmul.u32 %v1068, %v1069
    %v1074 = vmul.u32 %v1068, %v1070
    %v1075 = vshll.u32 %v1072, 16
    %v1076 = vshrl.u32 %v1072, 16
    %v1077 = vshll.u32 %v1073, 16
    %v1078 = vshrl.u32 %v1073, 16
    %vm1079 = vc.u32 %v1071, %v1075
    %v1080 = vsel %vm1079, 1, 0
    %v1081 = vadd.s32 %v1071, %v1075
    %v1082 = vadd.s32 %v1074, %v1080
    %vm1083 = vc.u32 %v1081, %v1077
    %v1084 = vsel %vm1083, 1, 0
    %v1085 = vadd.s32 %v1081, %v1077
    %v1086 = vadd.s32 %v1082, %v1084
    %v1087 = vadd.s32 %v1086, %v1076
    %v1088 = vadd.s32 %v1087, %v1078
    %v1089 = vand.u32 %v1066, 65535
    %v1090 = vshrl.u32 %v1066, 16
    %v1091 = vand.u32 %v1061, 65535
    %v1092 = vshrl.u32 %v1061, 16
    %v1093 = vmul.u32 %v1089, %v1091
    %v1094 = vmul.u32 %v1089, %v1092
    %v1095 = vmul.u32 %v1090, %v1091
    %v1096 = vmul.u32 %v1090, %v1092
    %v1097 = vshll.u32 %v1094, 16
    %v1098 = vshrl.u32 %v1094, 16
    %v1099 = vshll.u32 %v1095, 16
    %v1100 = vshrl.u32 %v1095, 16
    %vm1101 = vc.u32 %v1093, %v1097
    %v1102 = vsel %vm1101, 1, 0
    %v1103 = vadd.s32 %v1093, %v1097
    %v1104 = vadd.s32 %v1096, %v1102
    %vm1105 = vc.u32 %v1103, %v1099
    %v1106 = vsel %vm1105, 1, 0
    %v1107 = vadd.s32 %v1103, %v1099
    %v1108 = vadd.s32 %v1104, %v1106
    %v1109 = vadd.s32 %v1108, %v1098
    %v1110 = vadd.s32 %v1109, %v1100
    %v1111 = vmul.u32 %v1066, %v1057
    %v1112 = vadd.s32 %v1088, %v1107
    %vm1113 = vc.u32 %v1088, %v1107
    %v1114 = vadd.s32 %v1110, 1
    %v1115 = vsel %vm1113, %v1114, %v1110
    %v1116 = vadd.s32 %v1111, %v1115
    %v1117 = vadd.s32 %v1116, 536870912
    %v1118 = vshrl.u32 %v1117, 30
    %v1119 = vshll.u32 %v1118, 30
    %v1120 = vsub.s32 %v1116, %v1119
    %vm1121 = vcmp.lt.s32.totalorder %v1120, 0
    %v1122 = vsub.s32 0, %v1120
    %v1123 = vsel %vm1121, %v1122, %v1120
    %v1124 = vclz %v1123
    %v1125 = vsub.s32 %v1124, 2
    %vm1126 = vcmp.gt.s32.totalorder 0, %v1125
    %v1127 = vsel %vm1126, 0, %v1125
    %v1128 = vsub.s32 32, %v1127
    %v1129 = vshll.u32 %v1120, %v1127
    %v1130 = vshrl.u32 %v1112, %v1128
    %v1131 = vor.u32 %v1129, %v1130
    %v1132 = vsub.s32 4294967266, %v1127
    %v1133 = vadd.s32 %v1132, 127
    %v1134 = vshll.u32 %v1133, 23
    %v1135 = vor.u32 4788187, %v1134
    %v1136 = vand.u32 2147483647, %v1135
    %v1138 = vcvt.s32.f32 %v1131
    %v1139 = vmul.f32 %v1138, %v1136
    %v1140 = vxor.u32 %v1139, 2147483648
    %v1141 = vsel %vm1020, %v1140, %v1139
    %v1142 = vsub.s32 4, %v1118
    %v1143 = vsel %vm1020, %v1142, %v1118
    %v1144 = vsel %vm1019, %v863, %v1141
    %v1145 = vsel %vm1019, 0, %v1143
    %v1146 = vmul.f32 %v1144, %v1144
    %v1147 = vmul.f32 %v1146, -0.001358992
    %v1148 = vadd.f32 %v1147, 0.041655596
    %v1149 = vmul.f32 %v1146, %v1148
    %v1150 = vadd.f32 %v1149, -0.4999988
    %v1151 = vmul.f32 %v1146, %v1150
    %v1152 = vadd.f32 1.0, %v1151
    %v1153 = vmul.f32 %v1144, %v1144
    %v1154 = vmul.f32 %v1153, -0.00019511016
    %v1155 = vadd.f32 %v1154, 0.008332121
    %v1156 = vmul.f32 %v1153, %v1155
    %v1157 = vadd.f32 %v1156, -0.16666654
    %v1158 = vmul.f32 %v1153, %v1157
    %v1159 = vadd.f32 %v1158, 1.0
    %v1160 = vmul.f32 %v1159, %v1144
    %vm1161 = vweird.f32 %v863
    %v1162 = vadd.s32 %v1145, 3
    %v1163 = vand.u32 %v1162, 3
    %vm1164 = vcmp.lt.s32.totalorder %v1163, 2
    %vm1165 = vcmp.eq.s32.totalorder %v1163, 0
    %v1166 = vxor.u32 %v1160, 2147483648
    %v1167 = vsel %vm1165, %v1152, %v1166
    %vm1168 = vcmp.eq.s32.totalorder %v1163, 2
    %v1169 = vxor.u32 %v1152, 2147483648
    %v1170 = vsel %vm1168, %v1169, %v1160
    %v1171 = vsel %vm1164, %v1167, %v1170
    %v1172 = vsel %vm1161, nan, %v1171
    %v1173 = vmul.f32 %v1172, 2.0
    %v1174 = vmul.f32 %v1173, %v1017
    %v1175 = vmul.f32 %v1173, %v1172
    %v1176 = vsub.f32 1.0, %v1175
    %v1178 = vrot.slane %v1172, 7
    %v1181 = vrot.slane %v1176, 6
    %v1184 = vrot.slane %v1174, 5
    %v1186 = vsel %vm397, %v1017, %v1178
    %v1187 = vsel %vm400, %v1186, %v388
    %v1188 = vsel %vm400, %v399, %v1181
    %v1189 = vsel %vm403, %v1187, %v393
    %v1190 = vsel %vm403, %v1188, %v1184
    %1191 = vmatpush.msra.mxu0 %v51
    %1192 = vmatpush.msra.mxu0 %v50
    %1193 = vmatpush.msra.mxu0 %v49
    %1194 = vmatpush.msra.mxu0 %v48
    %1195 = vmatpush.msra.mxu0 %v47
    %1196 = vmatpush.msra.mxu0 %v46
    %1197 = vmatpush.msra.mxu0 %v45
    %1198 = vmatpush.msra.mxu0 %v44
    %1199 = vmatpush.msra.mxu0 %v43
    %1200 = vmatpush.msra.mxu0 %v42
    %1201 = vmatpush.msra.mxu0 %v41
    %1202 = vmatpush.msra.mxu0 %v40
    %1203 = vmatpush.msra.mxu0 %v39
    %1204 = vmatpush.msra.mxu0 %v38
    %1205 = vmatpush.msra.mxu0 %v37
    %1206 = vmatpush.msra.mxu0 %v36
    %1207 = vmatmul.f32.gmra.mxu0 %v1189
    %v1208 = vpop.f32.mrf.mxu0
    %v1209 = vadd.f32 0.0, %v1208
    %1210 = vdwg.mxu0
    %1211 = vmatpush.msra.mxu0 %v67
    %1212 = vmatpush.msra.mxu0 %v66
    %1213 = vmatpush.msra.mxu0 %v65
    %1214 = vmatpush.msra.mxu0 %v64
    %1215 = vmatpush.msra.mxu0 %v63
    %1216 = vmatpush.msra.mxu0 %v62
    %1217 = vmatpush.msra.mxu0 %v61
    %1218 = vmatpush.msra.mxu0 %v60
    %1219 = vmatpush.msra.mxu0 %v59
    %1220 = vmatpush.msra.mxu0 %v58
    %1221 = vmatpush.msra.mxu0 %v57
    %1222 = vmatpush.msra.mxu0 %v56
    %1223 = vmatpush.msra.mxu0 %v55
    %1224 = vmatpush.msra.mxu0 %v54
    %1225 = vmatpush.msra.mxu0 %v53
    %1226 = vmatpush.msra.mxu0 %v52
    %1227 = vmatmul.f32.gmra.mxu0 %v1190
    %v1228 = vpop.f32.mrf.mxu0
    %v1229 = vadd.f32 %v1209, %v1228
    %1230 = vdwg.mxu0
    %v1231 = vsub.f32 0.0, %v1017
    %v1232 = vsub.f32 0.0, %v1176
    %v1234 = vperm.slane %v1231, 0
    %v1236 = vperm.slane %v1174, 0
    %v1239 = vperm.slane %v1232, 0
    %v1241 = vsel %vm397, %v1172, %v1234
    %v1242 = vsel %vm400, %v1241, %v1236
    %v1243 = vsel %vm403, %v1242, %v1239
    %v1244 = vmul.f32 %v1243, %v1229
    %v1245 = vsel %vm460, %v1244, 0.0
    %v1246 = vrot.slane %v1245, 4
    %v1247 = vadd.f32 %v1245, %v1246
    %v1248 = vrot.slane %v1247, 2
    %v1249 = vadd.f32 %v1247, %v1248
    %v1250 = vrot.slane %v1249, 1
    %v1251 = vadd.f32 %v1249, %v1250
    %v1252 = vsub.f32 %v35, %v1251
    %v1253 = vmul.f32 %v1252, 0.01
    %v1254 = vadd.f32 %v34, %v1253
    %v1255 = vand.u32 2147483647, %v1254
    %vm1256 = vcmp.le.f32.partialorder %v1255, 0.7853982
    %vm1257 = vcmp.lt.s32.totalorder %v1254, 0
    %v1258 = vand.u32 %v1254, 2139095040
    %v1259 = vshrl.u32 %v1258, 23
    %v1260 = vsub.s32 %v1259, 127
    %v1261 = vand.u32 2147483647, %v1254
    %v1262 = vand.u32 %v1261, 8388607
    %v1263 = vor.u32 %v1262, 8388608
    %v1264 = vsub.s32 0, %v1263
    %v1265 = vadd.s32 %v1260, 1
    %vm1266 = vcmp.gt.s32.totalorder %v1265, 0
    %v1267 = vsel %vm1266, %v1265, 0
    %v1268 = vshrl.u32 %v1267, 5
    %v1269 = vand.u32 %v1267, 31
    %v1270 = vsub.s32 32, %v1269
    %v1271 = vshrl.u32 683565275, %v1270
    %v1272 = vshll.u32 683565275, %v1269
    %v1273 = vshrl.u32 2475754826, %v1270
    %v1274 = vor.u32 %v1272, %v1273
    %v1275 = vshll.u32 2475754826, %v1269
    %v1276 = vshrl.u32 2131351028, %v1270
    %v1277 = vor.u32 %v1275, %v1276
    %v1278 = vshll.u32 2131351028, %v1269
    %v1279 = vshrl.u32 2102212464, %v1270
    %v1280 = vor.u32 %v1278, %v1279
    %v1281 = vshll.u32 2102212464, %v1269
    %v1282 = vshrl.u32 920167782, %v1270
    %v1283 = vor.u32 %v1281, %v1282
    %v1284 = vshll.u32 920167782, %v1269
    %v1285 = vshrl.u32 1326507024, %v1270
    %v1286 = vor.u32 %v1284, %v1285
    %vm1287 = vcmp.lt.s32.totalorder %v1268, 1
    %vm1288 = vcmp.lt.s32.totalorder %v1268, 2
    %vm1289 = vcmp.lt.s32.totalorder %v1268, 3
    %vm1290 = vcmp.lt.s32.totalorder %v1268, 4
    %v1291 = vsel %vm1287, %v1271, %v1274
    %v1292 = vsel %vm1290, %v1280, 2102212464
    %v1293 = vsel %vm1289, %v1277, %v1292
    %v1294 = vsel %vm1288, %v1291, %v1293
    %v1295 = vsel %vm1287, %v1274, %v1277
    %v1296 = vsel %vm1290, %v1283, 920167782
    %v1297 = vsel %vm1289, %v1280, %v1296
    %v1298 = vsel %vm1288, %v1295, %v1297
    %v1299 = vsel %vm1287, %v1277, %v1280
    %v1300 = vsel %vm1290, %v1286, 1326507024
    %v1301 = vsel %vm1289, %v1283, %v1300
    %v1302 = vsel %vm1288, %v1299, %v1301
    %v1303 = vshll.u32 %v1263, 8
    %v1304 = vand.u32 %v1303, 65535
    %v1305 = vshrl.u32 %v1303, 16
    %v1306 = vand.u32 %v1302, 65535
    %v1307 = vshrl.u32 %v1302, 16
    %v1308 = vmul.u32 %v1304, %v1306
    %v1309 = vmul.u32 %v1304, %v1307
    %v1310 = vmul.u32 %v1305, %v1306
    %v1311 = vmul.u32 %v1305, %v1307
    %v1312 = vshll.u32 %v1309, 16
    %v1313 = vshrl.u32 %v1309, 16
    %v1314 = vshll.u32 %v1310, 16
    %v1315 = vshrl.u32 %v1310, 16
    %vm1316 = vc.u32 %v1308, %v1312
    %v1317 = vsel %vm1316, 1, 0
    %v1318 = vadd.s32 %v1308, %v1312
    %v1319 = vadd.s32 %v1311, %v1317
    %vm1320 = vc.u32 %v1318, %v1314
    %v1321 = vsel %vm1320, 1, 0
    %v1322 = vadd.s32 %v1318, %v1314
    %v1323 = vadd.s32 %v1319, %v1321
    %v1324 = vadd.s32 %v1323, %v1313
    %v1325 = vadd.s32 %v1324, %v1315
    %v1326 = vand.u32 %v1303, 65535
    %v1327 = vshrl.u32 %v1303, 16
    %v1328 = vand.u32 %v1298, 65535
    %v1329 = vshrl.u32 %v1298, 16
    %v1330 = vmul.u32 %v1326, %v1328
    %v1331 = vmul.u32 %v1326, %v1329
    %v1332 = vmul.u32 %v1327, %v1328
    %v1333 = vmul.u32 %v1327, %v1329
    %v1334 = vshll.u32 %v1331, 16
    %v1335 = vshrl.u32 %v1331, 16
    %v1336 = vshll.u32 %v1332, 16
    %v1337 = vshrl.u32 %v1332, 16
    %vm1338 = vc.u32 %v1330, %v1334
    %v1339 = vsel %vm1338, 1, 0
    %v1340 = vadd.s32 %v1330, %v1334
    %v1341 = vadd.s32 %v1333, %v1339
    %vm1342 = vc.u32 %v1340, %v1336
    %v1343 = vsel %vm1342, 1, 0
    %v1344 = vadd.s32 %v1340, %v1336
    %v1345 = vadd.s32 %v1341, %v1343
    %v1346 = vadd.s32 %v1345, %v1335
    %v1347 = vadd.s32 %v1346, %v1337
    %v1348 = vmul.u32 %v1303, %v1294
    %v1349 = vadd.s32 %v1325, %v1344
    %vm1350 = vc.u32 %v1325, %v1344
    %v1351 = vadd.s32 %v1347, 1
    %v1352 = vsel %vm1350, %v1351, %v1347
    %v1353 = vadd.s32 %v1348, %v1352
    %v1354 = vadd.s32 %v1353, 536870912
    %v1355 = vshrl.u32 %v1354, 30
    %v1356 = vshll.u32 %v1355, 30
    %v1357 = vsub.s32 %v1353, %v1356
    %vm1358 = vcmp.lt.s32.totalorder %v1357, 0
    %v1359 = vsub.s32 0, %v1357
    %v1360 = vsel %vm1358, %v1359, %v1357
    %v1361 = vclz %v1360
    %v1362 = vsub.s32 %v1361, 2
    %vm1363 = vcmp.gt.s32.totalorder 0, %v1362
    %v1364 = vsel %vm1363, 0, %v1362
    %v1365 = vsub.s32 32, %v1364
    %v1366 = vshll.u32 %v1357, %v1364
    %v1367 = vshrl.u32 %v1349, %v1365
    %v1368 = vor.u32 %v1366, %v1367
    %v1369 = vsub.s32 4294967266, %v1364
    %v1370 = vadd.s32 %v1369, 127
    %v1371 = vshll.u32 %v1370, 23
    %v1372 = vor.u32 4788187, %v1371
    %v1373 = vand.u32 2147483647, %v1372
    %v1375 = vcvt.s32.f32 %v1368
    %v1376 = vmul.f32 %v1375, %v1373
    %v1377 = vxor.u32 %v1376, 2147483648
    %v1378 = vsel %vm1257, %v1377, %v1376
    %v1379 = vsub.s32 4, %v1355
    %v1380 = vsel %vm1257, %v1379, %v1355
    %v1381 = vsel %vm1256, %v1254, %v1378
    %v1382 = vsel %vm1256, 0, %v1380
    %v1383 = vmul.f32 %v1381, %v1381
    %v1384 = vmul.f32 %v1383, -0.001358992
    %v1385 = vadd.f32 %v1384, 0.041655596
    %v1386 = vmul.f32 %v1383, %v1385
    %v1387 = vadd.f32 %v1386, -0.4999988
    %v1388 = vmul.f32 %v1383, %v1387
    %v1389 = vadd.f32 1.0, %v1388
    %v1390 = vmul.f32 %v1381, %v1381
    %v1391 = vmul.f32 %v1390, -0.00019511016
    %v1392 = vadd.f32 %v1391, 0.008332121
    %v1393 = vmul.f32 %v1390, %v1392
    %v1394 = vadd.f32 %v1393, -0.16666654
    %v1395 = vmul.f32 %v1390, %v1394
    %v1396 = vadd.f32 %v1395, 1.0
    %v1397 = vmul.f32 %v1396, %v1381
    %vm1398 = vweird.f32 %v1254
    %v1399 = vand.u32 %v1382, 3
    %vm1400 = vcmp.lt.s32.totalorder %v1399, 2
    %vm1401 = vcmp.eq.s32.totalorder %v1399, 0
    %v1402 = vxor.u32 %v1397, 2147483648
    %v1403 = vsel %vm1401, %v1389, %v1402
    %vm1404 = vcmp.eq.s32.totalorder %v1399, 2
    %v1405 = vxor.u32 %v1389, 2147483648
    %v1406 = vsel %vm1404, %v1405, %v1397
    %v1407 = vsel %vm1400, %v1403, %v1406
    %v1408 = vsel %vm1398, nan, %v1407
    %v1409 = vand.u32 2147483647, %v1254
    %vm1410 = vcmp.le.f32.partialorder %v1409, 0.7853982
    %vm1411 = vcmp.lt.s32.totalorder %v1254, 0
    %v1412 = vand.u32 %v1254, 2139095040
    %v1413 = vshrl.u32 %v1412, 23
    %v1414 = vsub.s32 %v1413, 127
    %v1415 = vand.u32 2147483647, %v1254
    %v1416 = vand.u32 %v1415, 8388607
    %v1417 = vor.u32 %v1416, 8388608
    %v1418 = vsub.s32 0, %v1417
    %v1419 = vadd.s32 %v1414, 1
    %vm1420 = vcmp.gt.s32.totalorder %v1419, 0
    %v1421 = vsel %vm1420, %v1419, 0
    %v1422 = vshrl.u32 %v1421, 5
    %v1423 = vand.u32 %v1421, 31
    %v1424 = vsub.s32 32, %v1423
    %v1425 = vshrl.u32 683565275, %v1424
    %v1426 = vshll.u32 683565275, %v1423
    %v1427 = vshrl.u32 2475754826, %v1424
    %v1428 = vor.u32 %v1426, %v1427
    %v1429 = vshll.u32 2475754826, %v1423
    %v1430 = vshrl.u32 2131351028, %v1424
    %v1431 = vor.u32 %v1429, %v1430
    %v1432 = vshll.u32 2131351028, %v1423
    %v1433 = vshrl.u32 2102212464, %v1424
    %v1434 = vor.u32 %v1432, %v1433
    %v1435 = vshll.u32 2102212464, %v1423
    %v1436 = vshrl.u32 920167782, %v1424
    %v1437 = vor.u32 %v1435, %v1436
    %v1438 = vshll.u32 920167782, %v1423
    %v1439 = vshrl.u32 1326507024, %v1424
    %v1440 = vor.u32 %v1438, %v1439
    %vm1441 = vcmp.lt.s32.totalorder %v1422, 1
    %vm1442 = vcmp.lt.s32.totalorder %v1422, 2
    %vm1443 = vcmp.lt.s32.totalorder %v1422, 3
    %vm1444 = vcmp.lt.s32.totalorder %v1422, 4
    %v1445 = vsel %vm1441, %v1425, %v1428
    %v1446 = vsel %vm1444, %v1434, 2102212464
    %v1447 = vsel %vm1443, %v1431, %v1446
    %v1448 = vsel %vm1442, %v1445, %v1447
    %v1449 = vsel %vm1441, %v1428, %v1431
    %v1450 = vsel %vm1444, %v1437, 920167782
    %v1451 = vsel %vm1443, %v1434, %v1450
    %v1452 = vsel %vm1442, %v1449, %v1451
    %v1453 = vsel %vm1441, %v1431, %v1434
    %v1454 = vsel %vm1444, %v1440, 1326507024
    %v1455 = vsel %vm1443, %v1437, %v1454
    %v1456 = vsel %vm1442, %v1453, %v1455
    %v1457 = vshll.u32 %v1417, 8
    %v1458 = vand.u32 %v1457, 65535
    %v1459 = vshrl.u32 %v1457, 16
    %v1460 = vand.u32 %v1456, 65535
    %v1461 = vshrl.u32 %v1456, 16
    %v1462 = vmul.u32 %v1458, %v1460
    %v1463 = vmul.u32 %v1458, %v1461
    %v1464 = vmul.u32 %v1459, %v1460
    %v1465 = vmul.u32 %v1459, %v1461
    %v1466 = vshll.u32 %v1463, 16
    %v1467 = vshrl.u32 %v1463, 16
    %v1468 = vshll.u32 %v1464, 16
    %v1469 = vshrl.u32 %v1464, 16
    %vm1470 = vc.u32 %v1462, %v1466
    %v1471 = vsel %vm1470, 1, 0
    %v1472 = vadd.s32 %v1462, %v1466
    %v1473 = vadd.s32 %v1465, %v1471
    %vm1474 = vc.u32 %v1472, %v1468
    %v1475 = vsel %vm1474, 1, 0
    %v1476 = vadd.s32 %v1472, %v1468
    %v1477 = vadd.s32 %v1473, %v1475
    %v1478 = vadd.s32 %v1477, %v1467
    %v1479 = vadd.s32 %v1478, %v1469
    %v1480 = vand.u32 %v1457, 65535
    %v1481 = vshrl.u32 %v1457, 16
    %v1482 = vand.u32 %v1452, 65535
    %v1483 = vshrl.u32 %v1452, 16
    %v1484 = vmul.u32 %v1480, %v1482
    %v1485 = vmul.u32 %v1480, %v1483
    %v1486 = vmul.u32 %v1481, %v1482
    %v1487 = vmul.u32 %v1481, %v1483
    %v1488 = vshll.u32 %v1485, 16
    %v1489 = vshrl.u32 %v1485, 16
    %v1490 = vshll.u32 %v1486, 16
    %v1491 = vshrl.u32 %v1486, 16
    %vm1492 = vc.u32 %v1484, %v1488
    %v1493 = vsel %vm1492, 1, 0
    %v1494 = vadd.s32 %v1484, %v1488
    %v1495 = vadd.s32 %v1487, %v1493
    %vm1496 = vc.u32 %v1494, %v1490
    %v1497 = vsel %vm1496, 1, 0
    %v1498 = vadd.s32 %v1494, %v1490
    %v1499 = vadd.s32 %v1495, %v1497
    %v1500 = vadd.s32 %v1499, %v1489
    %v1501 = vadd.s32 %v1500, %v1491
    %v1502 = vmul.u32 %v1457, %v1448
    %v1503 = vadd.s32 %v1479, %v1498
    %vm1504 = vc.u32 %v1479, %v1498
    %v1505 = vadd.s32 %v1501, 1
    %v1506 = vsel %vm1504, %v1505, %v1501
    %v1507 = vadd.s32 %v1502, %v1506
    %v1508 = vadd.s32 %v1507, 536870912
    %v1509 = vshrl.u32 %v1508, 30
    %v1510 = vshll.u32 %v1509, 30
    %v1511 = vsub.s32 %v1507, %v1510
    %vm1512 = vcmp.lt.s32.totalorder %v1511, 0
    %v1513 = vsub.s32 0, %v1511
    %v1514 = vsel %vm1512, %v1513, %v1511
    %v1515 = vclz %v1514
    %v1516 = vsub.s32 %v1515, 2
    %vm1517 = vcmp.gt.s32.totalorder 0, %v1516
    %v1518 = vsel %vm1517, 0, %v1516
    %v1519 = vsub.s32 32, %v1518
    %v1520 = vshll.u32 %v1511, %v1518
    %v1521 = vshrl.u32 %v1503, %v1519
    %v1522 = vor.u32 %v1520, %v1521
    %v1523 = vsub.s32 4294967266, %v1518
    %v1524 = vadd.s32 %v1523, 127
    %v1525 = vshll.u32 %v1524, 23
    %v1526 = vor.u32 4788187, %v1525
    %v1527 = vand.u32 2147483647, %v1526
    %v1529 = vcvt.s32.f32 %v1522
    %v1530 = vmul.f32 %v1529, %v1527
    %v1531 = vxor.u32 %v1530, 2147483648
    %v1532 = vsel %vm1411, %v1531, %v1530
    %v1533 = vsub.s32 4, %v1509
    %v1534 = vsel %vm1411, %v1533, %v1509
    %v1535 = vsel %vm1410, %v1254, %v1532
    %v1536 = vsel %vm1410, 0, %v1534
    %v1537 = vmul.f32 %v1535, %v1535
    %v1538 = vmul.f32 %v1537, -0.001358992
    %v1539 = vadd.f32 %v1538, 0.041655596
    %v1540 = vmul.f32 %v1537, %v1539
    %v1541 = vadd.f32 %v1540, -0.4999988
    %v1542 = vmul.f32 %v1537, %v1541
    %v1543 = vadd.f32 1.0, %v1542
    %v1544 = vmul.f32 %v1535, %v1535
    %v1545 = vmul.f32 %v1544, -0.00019511016
    %v1546 = vadd.f32 %v1545, 0.008332121
    %v1547 = vmul.f32 %v1544, %v1546
    %v1548 = vadd.f32 %v1547, -0.16666654
    %v1549 = vmul.f32 %v1544, %v1548
    %v1550 = vadd.f32 %v1549, 1.0
    %v1551 = vmul.f32 %v1550, %v1535
    %vm1552 = vweird.f32 %v1254
    %v1553 = vadd.s32 %v1536, 3
    %v1554 = vand.u32 %v1553, 3
    %vm1555 = vcmp.lt.s32.totalorder %v1554, 2
    %vm1556 = vcmp.eq.s32.totalorder %v1554, 0
    %v1557 = vxor.u32 %v1551, 2147483648
    %v1558 = vsel %vm1556, %v1543, %v1557
    %vm1559 = vcmp.eq.s32.totalorder %v1554, 2
    %v1560 = vxor.u32 %v1543, 2147483648
    %v1561 = vsel %vm1559, %v1560, %v1551
    %v1562 = vsel %vm1555, %v1558, %v1561
    %v1563 = vsel %vm1552, nan, %v1562
    %v1564 = vmul.f32 %v1563, 2.0
    %v1565 = vmul.f32 %v1564, %v1408
    %v1566 = vmul.f32 %v1564, %v1563
    %v1567 = vsub.f32 1.0, %v1566
    %v1569 = vrot.slane %v1563, 7
    %v1572 = vrot.slane %v1567, 6
    %v1575 = vrot.slane %v1565, 5
    %v1577 = vsel %vm397, %v1408, %v1569
    %v1578 = vsel %vm400, %v1577, %v388
    %v1579 = vsel %vm400, %v399, %v1572
    %v1580 = vsel %vm403, %v1578, %v393
    %v1581 = vsel %vm403, %v1579, %v1575
    %1582 = vmatpush.msra.mxu0 %v51
    %1583 = vmatpush.msra.mxu0 %v50
    %1584 = vmatpush.msra.mxu0 %v49
    %1585 = vmatpush.msra.mxu0 %v48
    %1586 = vmatpush.msra.mxu0 %v47
    %1587 = vmatpush.msra.mxu0 %v46
    %1588 = vmatpush.msra.mxu0 %v45
    %1589 = vmatpush.msra.mxu0 %v44
    %1590 = vmatpush.msra.mxu0 %v43
    %1591 = vmatpush.msra.mxu0 %v42
    %1592 = vmatpush.msra.mxu0 %v41
    %1593 = vmatpush.msra.mxu0 %v40
    %1594 = vmatpush.msra.mxu0 %v39
    %1595 = vmatpush.msra.mxu0 %v38
    %1596 = vmatpush.msra.mxu0 %v37
    %1597 = vmatpush.msra.mxu0 %v36
    %1598 = vmatmul.f32.gmra.mxu0 %v1580
    %v1599 = vpop.f32.mrf.mxu0
    %v1600 = vadd.f32 0.0, %v1599
    %1601 = vdwg.mxu0
    %1602 = vmatpush.msra.mxu0 %v67
    %1603 = vmatpush.msra.mxu0 %v66
    %1604 = vmatpush.msra.mxu0 %v65
    %1605 = vmatpush.msra.mxu0 %v64
    %1606 = vmatpush.msra.mxu0 %v63
    %1607 = vmatpush.msra.mxu0 %v62
    %1608 = vmatpush.msra.mxu0 %v61
    %1609 = vmatpush.msra.mxu0 %v60
    %1610 = vmatpush.msra.mxu0 %v59
    %1611 = vmatpush.msra.mxu0 %v58
    %1612 = vmatpush.msra.mxu0 %v57
    %1613 = vmatpush.msra.mxu0 %v56
    %1614 = vmatpush.msra.mxu0 %v55
    %1615 = vmatpush.msra.mxu0 %v54
    %1616 = vmatpush.msra.mxu0 %v53
    %1617 = vmatpush.msra.mxu0 %v52
    %1618 = vmatmul.f32.gmra.mxu0 %v1581
    %v1619 = vpop.f32.mrf.mxu0
    %v1620 = vadd.f32 %v1600, %v1619
    %1621 = vdwg.mxu0
    %v1622 = vsub.f32 0.0, %v1408
    %v1623 = vsub.f32 0.0, %v1567
    %v1625 = vperm.slane %v1622, 0
    %v1627 = vperm.slane %v1565, 0
    %v1630 = vperm.slane %v1623, 0
    %v1632 = vsel %vm397, %v1563, %v1625
    %v1633 = vsel %vm400, %v1632, %v1627
    %v1634 = vsel %vm403, %v1633, %v1630
    %v1635 = vmul.f32 %v1634, %v1620
    %v1636 = vsel %vm460, %v1635, 0.0
    %v1637 = vrot.slane %v1636, 4
    %v1638 = vadd.f32 %v1636, %v1637
    %v1639 = vrot.slane %v1638, 2
    %v1640 = vadd.f32 %v1638, %v1639
    %v1641 = vrot.slane %v1640, 1
    %v1642 = vadd.f32 %v1640, %v1641
    %v1643 = vsub.f32 %v35, %v1642
    %v1644 = vmul.f32 %v1643, 0.01
    %v1645 = vmul.f32 %v861, 2.0
    %v1646 = vadd.f32 %v469, %v1645
    %v1647 = vmul.f32 %v1253, 2.0
    %v1648 = vadd.f32 %v1646, %v1647
    %v1649 = vadd.f32 %v1648, %v1644
    %v1650 = vmul.f32 %v1649, 0.16666667
    %v1651 = vadd.f32 %v34, %v1650
    %1652 = vst [vmem:[#allocation6] sm:$0x1] %v1651
    %v1653 = vlaneseq
    %v1654 = vand.u32 %v1653, 127
    %vm1655 = vcmp.eq.s32.totalorder %v1654, 2
    %vm1656 = vcmp.eq.s32.totalorder %v1654, 3
    %v1657 = vsel %vm1656, -1.0, 0.0
    %v1658 = vsel %vm1655, 1.0, %v1657
    %v1659 = vmul.f32 %v1651, %v1658
    %v1660 = vsel %vm397, %v1659, 0.0
    %1661 = vadd.xlane.f32.xlu0 %v1660
    %v1662 = vpop.xlane.xlu0 %1661
    %v1663 = vand.u32 2147483647, %v1662
    %vm1664 = vcmp.le.f32.partialorder %v1663, 0.7853982
    %vm1665 = vcmp.lt.s32.totalorder %v1662, 0
    %v1666 = vand.u32 %v1662, 2139095040
    %v1667 = vshrl.u32 %v1666, 23
    %v1668 = vsub.s32 %v1667, 127
    %v1669 = vand.u32 2147483647, %v1662
    %v1670 = vand.u32 %v1669, 8388607
    %v1671 = vor.u32 %v1670, 8388608
    %v1672 = vsub.s32 0, %v1671
    %v1673 = vadd.s32 %v1668, 1
    %vm1674 = vcmp.gt.s32.totalorder %v1673, 0
    %v1675 = vsel %vm1674, %v1673, 0
    %v1676 = vshrl.u32 %v1675, 5
    %v1677 = vand.u32 %v1675, 31
    %v1678 = vsub.s32 32, %v1677
    %v1679 = vshrl.u32 683565275, %v1678
    %v1680 = vshll.u32 683565275, %v1677
    %v1681 = vshrl.u32 2475754826, %v1678
    %v1682 = vor.u32 %v1680, %v1681
    %v1683 = vshll.u32 2475754826, %v1677
    %v1684 = vshrl.u32 2131351028, %v1678
    %v1685 = vor.u32 %v1683, %v1684
    %v1686 = vshll.u32 2131351028, %v1677
    %v1687 = vshrl.u32 2102212464, %v1678
    %v1688 = vor.u32 %v1686, %v1687
    %v1689 = vshll.u32 2102212464, %v1677
    %v1690 = vshrl.u32 920167782, %v1678
    %v1691 = vor.u32 %v1689, %v1690
    %v1692 = vshll.u32 920167782, %v1677
    %v1693 = vshrl.u32 1326507024, %v1678
    %v1694 = vor.u32 %v1692, %v1693
    %vm1695 = vcmp.lt.s32.totalorder %v1676, 1
    %vm1696 = vcmp.lt.s32.totalorder %v1676, 2
    %vm1697 = vcmp.lt.s32.totalorder %v1676, 3
    %vm1698 = vcmp.lt.s32.totalorder %v1676, 4
    %v1699 = vsel %vm1695, %v1679, %v1682
    %v1700 = vsel %vm1698, %v1688, 2102212464
    %v1701 = vsel %vm1697, %v1685, %v1700
    %v1702 = vsel %vm1696, %v1699, %v1701
    %v1703 = vsel %vm1695, %v1682, %v1685
    %v1704 = vsel %vm1698, %v1691, 920167782
    %v1705 = vsel %vm1697, %v1688, %v1704
    %v1706 = vsel %vm1696, %v1703, %v1705
    %v1707 = vsel %vm1695, %v1685, %v1688
    %v1708 = vsel %vm1698, %v1694, 1326507024
    %v1709 = vsel %vm1697, %v1691, %v1708
    %v1710 = vsel %vm1696, %v1707, %v1709
    %v1711 = vshll.u32 %v1671, 8
    %v1712 = vand.u32 %v1711, 65535
    %v1713 = vshrl.u32 %v1711, 16
    %v1714 = vand.u32 %v1710, 65535
    %v1715 = vshrl.u32 %v1710, 16
    %v1716 = vmul.u32 %v1712, %v1714
    %v1717 = vmul.u32 %v1712, %v1715
    %v1718 = vmul.u32 %v1713, %v1714
    %v1719 = vmul.u32 %v1713, %v1715
    %v1720 = vshll.u32 %v1717, 16
    %v1721 = vshrl.u32 %v1717, 16
    %v1722 = vshll.u32 %v1718, 16
    %v1723 = vshrl.u32 %v1718, 16
    %vm1724 = vc.u32 %v1716, %v1720
    %v1725 = vsel %vm1724, 1, 0
    %v1726 = vadd.s32 %v1716, %v1720
    %v1727 = vadd.s32 %v1719, %v1725
    %vm1728 = vc.u32 %v1726, %v1722
    %v1729 = vsel %vm1728, 1, 0
    %v1730 = vadd.s32 %v1726, %v1722
    %v1731 = vadd.s32 %v1727, %v1729
    %v1732 = vadd.s32 %v1731, %v1721
    %v1733 = vadd.s32 %v1732, %v1723
    %v1734 = vand.u32 %v1711, 65535
    %v1735 = vshrl.u32 %v1711, 16
    %v1736 = vand.u32 %v1706, 65535
    %v1737 = vshrl.u32 %v1706, 16
    %v1738 = vmul.u32 %v1734, %v1736
    %v1739 = vmul.u32 %v1734, %v1737
    %v1740 = vmul.u32 %v1735, %v1736
    %v1741 = vmul.u32 %v1735, %v1737
    %v1742 = vshll.u32 %v1739, 16
    %v1743 = vshrl.u32 %v1739, 16
    %v1744 = vshll.u32 %v1740, 16
    %v1745 = vshrl.u32 %v1740, 16
    %vm1746 = vc.u32 %v1738, %v1742
    %v1747 = vsel %vm1746, 1, 0
    %v1748 = vadd.s32 %v1738, %v1742
    %v1749 = vadd.s32 %v1741, %v1747
    %vm1750 = vc.u32 %v1748, %v1744
    %v1751 = vsel %vm1750, 1, 0
    %v1752 = vadd.s32 %v1748, %v1744
    %v1753 = vadd.s32 %v1749, %v1751
    %v1754 = vadd.s32 %v1753, %v1743
    %v1755 = vadd.s32 %v1754, %v1745
    %v1756 = vmul.u32 %v1711, %v1702
    %v1757 = vadd.s32 %v1733, %v1752
    %vm1758 = vc.u32 %v1733, %v1752
    %v1759 = vadd.s32 %v1755, 1
    %v1760 = vsel %vm1758, %v1759, %v1755
    %v1761 = vadd.s32 %v1756, %v1760
    %v1762 = vadd.s32 %v1761, 536870912
    %v1763 = vshrl.u32 %v1762, 30
    %v1764 = vshll.u32 %v1763, 30
    %v1765 = vsub.s32 %v1761, %v1764
    %vm1766 = vcmp.lt.s32.totalorder %v1765, 0
    %v1767 = vsub.s32 0, %v1765
    %v1768 = vsel %vm1766, %v1767, %v1765
    %v1769 = vclz %v1768
    %v1770 = vsub.s32 %v1769, 2
    %vm1771 = vcmp.gt.s32.totalorder 0, %v1770
    %v1772 = vsel %vm1771, 0, %v1770
    %v1773 = vsub.s32 32, %v1772
    %v1774 = vshll.u32 %v1765, %v1772
    %v1775 = vshrl.u32 %v1757, %v1773
    %v1776 = vor.u32 %v1774, %v1775
    %v1777 = vsub.s32 4294967266, %v1772
    %v1778 = vadd.s32 %v1777, 127
    %v1779 = vshll.u32 %v1778, 23
    %v1780 = vor.u32 4788187, %v1779
    %v1781 = vand.u32 2147483647, %v1780
    %v1783 = vcvt.s32.f32 %v1776
    %v1784 = vmul.f32 %v1783, %v1781
    %v1785 = vxor.u32 %v1784, 2147483648
    %v1786 = vsel %vm1665, %v1785, %v1784
    %v1787 = vsub.s32 4, %v1763
    %v1788 = vsel %vm1665, %v1787, %v1763
    %v1789 = vsel %vm1664, %v1662, %v1786
    %v1790 = vsel %vm1664, 0, %v1788
    %v1791 = vmul.f32 %v1789, %v1789
    %v1792 = vmul.f32 %v1791, -0.001358992
    %v1793 = vadd.f32 %v1792, 0.041655596
    %v1794 = vmul.f32 %v1791, %v1793
    %v1795 = vadd.f32 %v1794, -0.4999988
    %v1796 = vmul.f32 %v1791, %v1795
    %v1797 = vadd.f32 1.0, %v1796
    %v1798 = vmul.f32 %v1789, %v1789
    %v1799 = vmul.f32 %v1798, -0.00019511016
    %v1800 = vadd.f32 %v1799, 0.008332121
    %v1801 = vmul.f32 %v1798, %v1800
    %v1802 = vadd.f32 %v1801, -0.16666654
    %v1803 = vmul.f32 %v1798, %v1802
    %v1804 = vadd.f32 %v1803, 1.0
    %v1805 = vmul.f32 %v1804, %v1789
    %vm1806 = vweird.f32 %v1662
    %v1807 = vadd.s32 %v1790, 3
    %v1808 = vand.u32 %v1807, 3
    %vm1809 = vcmp.lt.s32.totalorder %v1808, 2
    %vm1810 = vcmp.eq.s32.totalorder %v1808, 0
    %v1811 = vxor.u32 %v1805, 2147483648
    %v1812 = vsel %vm1810, %v1797, %v1811
    %vm1813 = vcmp.eq.s32.totalorder %v1808, 2
    %v1814 = vxor.u32 %v1797, 2147483648
    %v1815 = vsel %vm1813, %v1814, %v1805
    %v1816 = vsel %vm1809, %v1812, %v1815
    %v1817 = vsel %vm1806, nan, %v1816
    %v1818 = vand.u32 2147483647, %v1662
    %vm1819 = vcmp.le.f32.partialorder %v1818, 0.7853982
    %vm1820 = vcmp.lt.s32.totalorder %v1662, 0
    %v1821 = vand.u32 %v1662, 2139095040
    %v1822 = vshrl.u32 %v1821, 23
    %v1823 = vsub.s32 %v1822, 127
    %v1824 = vand.u32 2147483647, %v1662
    %v1825 = vand.u32 %v1824, 8388607
    %v1826 = vor.u32 %v1825, 8388608
    %v1827 = vsub.s32 0, %v1826
    %v1828 = vadd.s32 %v1823, 1
    %vm1829 = vcmp.gt.s32.totalorder %v1828, 0
    %v1830 = vsel %vm1829, %v1828, 0
    %v1831 = vshrl.u32 %v1830, 5
    %v1832 = vand.u32 %v1830, 31
    %v1833 = vsub.s32 32, %v1832
    %v1834 = vshrl.u32 683565275, %v1833
    %v1835 = vshll.u32 683565275, %v1832
    %v1836 = vshrl.u32 2475754826, %v1833
    %v1837 = vor.u32 %v1835, %v1836
    %v1838 = vshll.u32 2475754826, %v1832
    %v1839 = vshrl.u32 2131351028, %v1833
    %v1840 = vor.u32 %v1838, %v1839
    %v1841 = vshll.u32 2131351028, %v1832
    %v1842 = vshrl.u32 2102212464, %v1833
    %v1843 = vor.u32 %v1841, %v1842
    %v1844 = vshll.u32 2102212464, %v1832
    %v1845 = vshrl.u32 920167782, %v1833
    %v1846 = vor.u32 %v1844, %v1845
    %v1847 = vshll.u32 920167782, %v1832
    %v1848 = vshrl.u32 1326507024, %v1833
    %v1849 = vor.u32 %v1847, %v1848
    %vm1850 = vcmp.lt.s32.totalorder %v1831, 1
    %vm1851 = vcmp.lt.s32.totalorder %v1831, 2
    %vm1852 = vcmp.lt.s32.totalorder %v1831, 3
    %vm1853 = vcmp.lt.s32.totalorder %v1831, 4
    %v1854 = vsel %vm1850, %v1834, %v1837
    %v1855 = vsel %vm1853, %v1843, 2102212464
    %v1856 = vsel %vm1852, %v1840, %v1855
    %v1857 = vsel %vm1851, %v1854, %v1856
    %v1858 = vsel %vm1850, %v1837, %v1840
    %v1859 = vsel %vm1853, %v1846, 920167782
    %v1860 = vsel %vm1852, %v1843, %v1859
    %v1861 = vsel %vm1851, %v1858, %v1860
    %v1862 = vsel %vm1850, %v1840, %v1843
    %v1863 = vsel %vm1853, %v1849, 1326507024
    %v1864 = vsel %vm1852, %v1846, %v1863
    %v1865 = vsel %vm1851, %v1862, %v1864
    %v1866 = vshll.u32 %v1826, 8
    %v1867 = vand.u32 %v1866, 65535
    %v1868 = vshrl.u32 %v1866, 16
    %v1869 = vand.u32 %v1865, 65535
    %v1870 = vshrl.u32 %v1865, 16
    %v1871 = vmul.u32 %v1867, %v1869
    %v1872 = vmul.u32 %v1867, %v1870
    %v1873 = vmul.u32 %v1868, %v1869
    %v1874 = vmul.u32 %v1868, %v1870
    %v1875 = vshll.u32 %v1872, 16
    %v1876 = vshrl.u32 %v1872, 16
    %v1877 = vshll.u32 %v1873, 16
    %v1878 = vshrl.u32 %v1873, 16
    %vm1879 = vc.u32 %v1871, %v1875
    %v1880 = vsel %vm1879, 1, 0
    %v1881 = vadd.s32 %v1871, %v1875
    %v1882 = vadd.s32 %v1874, %v1880
    %vm1883 = vc.u32 %v1881, %v1877
    %v1884 = vsel %vm1883, 1, 0
    %v1885 = vadd.s32 %v1881, %v1877
    %v1886 = vadd.s32 %v1882, %v1884
    %v1887 = vadd.s32 %v1886, %v1876
    %v1888 = vadd.s32 %v1887, %v1878
    %v1889 = vand.u32 %v1866, 65535
    %v1890 = vshrl.u32 %v1866, 16
    %v1891 = vand.u32 %v1861, 65535
    %v1892 = vshrl.u32 %v1861, 16
    %v1893 = vmul.u32 %v1889, %v1891
    %v1894 = vmul.u32 %v1889, %v1892
    %v1895 = vmul.u32 %v1890, %v1891
    %v1896 = vmul.u32 %v1890, %v1892
    %v1897 = vshll.u32 %v1894, 16
    %v1898 = vshrl.u32 %v1894, 16
    %v1899 = vshll.u32 %v1895, 16
    %v1900 = vshrl.u32 %v1895, 16
    %vm1901 = vc.u32 %v1893, %v1897
    %v1902 = vsel %vm1901, 1, 0
    %v1903 = vadd.s32 %v1893, %v1897
    %v1904 = vadd.s32 %v1896, %v1902
    %vm1905 = vc.u32 %v1903, %v1899
    %v1906 = vsel %vm1905, 1, 0
    %v1907 = vadd.s32 %v1903, %v1899
    %v1908 = vadd.s32 %v1904, %v1906
    %v1909 = vadd.s32 %v1908, %v1898
    %v1910 = vadd.s32 %v1909, %v1900
    %v1911 = vmul.u32 %v1866, %v1857
    %v1912 = vadd.s32 %v1888, %v1907
    %vm1913 = vc.u32 %v1888, %v1907
    %v1914 = vadd.s32 %v1910, 1
    %v1915 = vsel %vm1913, %v1914, %v1910
    %v1916 = vadd.s32 %v1911, %v1915
    %v1917 = vadd.s32 %v1916, 536870912
    %v1918 = vshrl.u32 %v1917, 30
    %v1919 = vshll.u32 %v1918, 30
    %v1920 = vsub.s32 %v1916, %v1919
    %vm1921 = vcmp.lt.s32.totalorder %v1920, 0
    %v1922 = vsub.s32 0, %v1920
    %v1923 = vsel %vm1921, %v1922, %v1920
    %v1924 = vclz %v1923
    %v1925 = vsub.s32 %v1924, 2
    %vm1926 = vcmp.gt.s32.totalorder 0, %v1925
    %v1927 = vsel %vm1926, 0, %v1925
    %v1928 = vsub.s32 32, %v1927
    %v1929 = vshll.u32 %v1920, %v1927
    %v1930 = vshrl.u32 %v1912, %v1928
    %v1931 = vor.u32 %v1929, %v1930
    %v1932 = vsub.s32 4294967266, %v1927
    %v1933 = vadd.s32 %v1932, 127
    %v1934 = vshll.u32 %v1933, 23
    %v1935 = vor.u32 4788187, %v1934
    %v1936 = vand.u32 2147483647, %v1935
    %v1938 = vcvt.s32.f32 %v1931
    %v1939 = vmul.f32 %v1938, %v1936
    %v1940 = vxor.u32 %v1939, 2147483648
    %v1941 = vsel %vm1820, %v1940, %v1939
    %v1942 = vsub.s32 4, %v1918
    %v1943 = vsel %vm1820, %v1942, %v1918
    %v1944 = vsel %vm1819, %v1662, %v1941
    %v1945 = vsel %vm1819, 0, %v1943
    %v1946 = vmul.f32 %v1944, %v1944
    %v1947 = vmul.f32 %v1946, -0.001358992
    %v1948 = vadd.f32 %v1947, 0.041655596
    %v1949 = vmul.f32 %v1946, %v1948
    %v1950 = vadd.f32 %v1949, -0.4999988
    %v1951 = vmul.f32 %v1946, %v1950
    %v1952 = vadd.f32 1.0, %v1951
    %v1953 = vmul.f32 %v1944, %v1944
    %v1954 = vmul.f32 %v1953, -0.00019511016
    %v1955 = vadd.f32 %v1954, 0.008332121
    %v1956 = vmul.f32 %v1953, %v1955
    %v1957 = vadd.f32 %v1956, -0.16666654
    %v1958 = vmul.f32 %v1953, %v1957
    %v1959 = vadd.f32 %v1958, 1.0
    %v1960 = vmul.f32 %v1959, %v1944
    %vm1961 = vweird.f32 %v1662
    %v1962 = vand.u32 %v1945, 3
    %vm1963 = vcmp.lt.s32.totalorder %v1962, 2
    %vm1964 = vcmp.eq.s32.totalorder %v1962, 0
    %v1965 = vxor.u32 %v1960, 2147483648
    %v1966 = vsel %vm1964, %v1952, %v1965
    %vm1967 = vcmp.eq.s32.totalorder %v1962, 2
    %v1968 = vxor.u32 %v1952, 2147483648
    %v1969 = vsel %vm1967, %v1968, %v1960
    %v1970 = vsel %vm1963, %v1966, %v1969
    %v1971 = vsel %vm1961, nan, %v1970
    %v1972 = vadd.f32 %v1817, 1.0
    %v1973 = vmul.f32 %v1972, 0.5641896
    %v1974 = vsub.f32 1.0, %v1817
    %v1975 = vmul.f32 %v1974, 0.5641896
    %v1976 = vadd.f32 %v1971, 1.0
    %v1977 = vmul.f32 %v1976, 0.5641896
    %vm1978 = vcmp.eq.s32.totalorder %v1654, 0
    %vm1979 = vcmp.eq.s32.totalorder %v1654, 1
    %v1980 = vsel %vm1979, %v1975, %v1977
    %v1981 = vsel %vm1978, %v1973, %v1980
    %vm1982 = vcmp.lt.s32.totalorder %v1654, 3
    %v1983 = vmul.f32 %v1981, 1.442695
    %v1984 = vpow.pop %v1983
    %v1985 = vsel %vm1982, %v1984, 0.0
    %v1986 = vsel %vm397, %v1985, 0.0
    %1987 = vadd.xlane.f32.xlu0 %v1986
    %v1988 = vpop.xlane.xlu0 %1987
    %v1989 = vrcp.pop %v1988
    %v1990 = vmul.f32 %v1988, %v1989
    %v1991 = vsub.f32 1.0, %v1990
    %v1992 = vmul.f32 %v1989, %v1991
    %v1993 = vadd.f32 %v1989, %v1992
    %vm1994 = vweird.f32 %v1988
    %vm1995 = vweird.f32 %v1989
    %vm1996 = vmor %vm1994, %vm1995
    %v1997 = vsel %vm1996, %v1989, %v1993
    %v1998 = vand.u32 2147483647, %v1988
    %vm1999 = vcmp.eq.f32.partialorder %v1998, 8.507059e+37
    %v2000 = vand.u32 %v1988, 2147483648
    %v2001 = vor.u32 1.1754944e-38, %v2000
    %v2002 = vsel %vm1999, %v2001, %v1997
    %v2003 = vmul.f32 %v1985, %v2002
    %2004 = vst [vmem:[#allocation5] sm:$0x1] %v2003
    // Predicated region
    $region18: #{forward.1} parent=1 // pred_check
      _
    $region19: #{forward.1} parent=1 // pred_check_branch
      %2006 = sbr.rel (0) target = $region21
    $region20: #{forward.1} parent=1 // pred_region
      %2008 = vsyncadd [#allocation4], 0
      %s2010 = sshll.u32 [#allocation5], 4
      %s2011 = int_to_ptr.vmem [resolvable:$true] %s2010
      %s2012 = sshll.u32 %s3, 4
      %s2013 = int_to_ptr.hbm [resolvable:$true] %s2012
      %2015 = dma.vmem_to_hbm [thread:$0]  %s2011, 16, %s2013, [#allocation4]
    $region21: #{forward.1} parent=1 // pred_fallthru
      _
    // Predicated region
    $region22: #{forward.1} parent=1 // pred_check
      _
    $region23: #{forward.1} parent=1 // pred_check_branch
      %2017 = sbr.rel (0) target = $region25
    $region24: #{forward.1} parent=1 // pred_region
      %2019 = vsyncadd [#allocation7], 0
      %s2021 = sshll.u32 [#allocation6], 4
      %s2022 = int_to_ptr.vmem [resolvable:$true] %s2021
      %s2023 = sshll.u32 %s4, 4
      %s2024 = int_to_ptr.hbm [resolvable:$true] %s2023
      %2026 = dma.vmem_to_hbm [thread:$0]  %s2022, 16, %s2024, [#allocation7]
    $region25: #{forward.1} parent=1 // pred_fallthru
      _
    // Predicated region
    $region26: #{forward.1} parent=1 // pred_check
      _
    $region27: #{forward.1} parent=1 // pred_check_branch
      %2028 = sbr.rel (0) target = $region29
    $region28: #{forward.1} parent=1 // pred_region
      %2030 = dma.done [#allocation4], 16
    $region29: #{forward.1} parent=1 // pred_fallthru
      _
    // Predicated region
    $region30: #{forward.1} parent=1 // pred_check
      _
    $region31: #{forward.1} parent=1 // pred_check_branch
      %2032 = sbr.rel (0) target = $region33
    $region32: #{forward.1} parent=1 // pred_region
      %2034 = dma.done [#allocation7], 16
    $region33: #{forward.1} parent=1 // pred_fallthru
      _
    %2035 = vsyncpa [#allocation3], 1
    %2036 = vsyncpa [#allocation4], 1
    %2037 = vsyncpa [#allocation7], 1

</llo_original>
